<compile_context>
chip_gen: v7x
topology: tpu7x:2x2x1
jax: 0.10.0
libtpu: 0.0.40
codegen_flags: <defaults>
</compile_context>

<pallas_src>
import functools
import math

import jax
import jax.numpy as jnp
from jax import lax
from jax.experimental import pallas as pl
from jax.experimental.pallas import tpu as pltpu


# ----------------------------------------------------------------------------
# Fused Pallas kernel: one batch element per grid step
# ----------------------------------------------------------------------------

def fused_cross_attn_kernel(x_ref, ctx_ref, bias_ref,
                            wq_ref, bq_ref, wkv_ref, bkv_ref, wo_ref, bo_ref,
                            o_ref, *maybe_a_ref,
                            num_heads, head_dim, scale, return_weights):
    Dq = num_heads * head_dim

    x = x_ref[...]        # (Sq, Dq)
    ctx = ctx_ref[...]    # (Sk, Dk)
    bias = bias_ref[...]  # (1, Sk) additive mask bias: 0.0 keep / -1e30 masked

    # ---- projections (fused K/V matmul: N = 2*Dq lanes) ---------------------
    q = jnp.dot(x, wq_ref[...], preferred_element_type=jnp.float32) + bq_ref[...]
    kv = jnp.dot(ctx, wkv_ref[...], preferred_element_type=jnp.float32) + bkv_ref[...]
    q = q * scale                       # scale on the smaller (Sq, Dq) tensor
    k = kv[:, :Dq]
    v = kv[:, Dq:]

    # ---- per-head attention (heads packed along lanes, static slices) ------
    out_heads = []
    attn_heads = []
    for h in range(num_heads):
        lo = h * head_dim
        hi = lo + head_dim
        qh = q[:, lo:hi]                # (Sq, D)
        kh = k[:, lo:hi]                # (Sk, D)
        vh = v[:, lo:hi]                # (Sk, D)

        # contract last dims of q and k directly (no explicit transpose)
        dots = lax.dot_general(qh, kh, (((1,), (1,)), ((), ())),
                               preferred_element_type=jnp.float32)   # (Sq, Sk)
        dots = dots + bias

        # numerically-stable softmax over keys
        m = jnp.max(dots, axis=-1, keepdims=True)
        e = jnp.exp(dots - m)
        denom = jnp.sum(e, axis=-1, keepdims=True)
        r = pl.reciprocal(denom, approx=True)     # EUP slot (cheap)
        r = r * (2.0 - denom * r)                 # one Newton step -> ~f32 exact
        attn = e * r

        out_heads.append(jnp.dot(attn, vh, preferred_element_type=jnp.float32))
        if return_weights:
            attn_heads.append(attn)

    out = jnp.concatenate(out_heads, axis=-1)     # (Sq, Dq), lane-dense
    o_ref[...] = (jnp.dot(out, wo_ref[...], preferred_element_type=jnp.float32)
                  + bo_ref[...])

    if return_weights:
        # packed (Sq, H*Sk) lane-dense store; un-packed to (B,H,Sq,Sk) outside
        maybe_a_ref[0][...] = jnp.concatenate(attn_heads, axis=-1)


# ----------------------------------------------------------------------------
# Wrapper
# ----------------------------------------------------------------------------

def cross_attention_forward(x, context, params, num_heads, context_mask=None,
                            return_weights=True):
    B, Sq, Dq = x.shape
    _, Sk, Dk = context.shape
    head_dim = Dq // num_heads
    scale = head_dim ** (-0.5)

    # Fuse K/V weights; reshape biases to (1, N) rows for broadcast in-kernel.
    wkv = jnp.concatenate([params["wk"], params["wv"]], axis=1)        # (Dk, 2*Dq)
    bkv = jnp.concatenate([params["bk"], params["bv"]], axis=0).reshape(1, 2 * Dq)
    bq = params["bq"].reshape(1, Dq)
    bo = params["bo"].reshape(1, Dq)

    # Additive mask bias (0 keep / -1e30 masked) — avoids in-kernel cmp+select
    # and avoids NaN (inf - inf) for fully masked rows.
    if context_mask is None:
        bias = jnp.zeros((B, 1, Sk), jnp.float32)
    else:
        m = context_mask.astype(jnp.float32).reshape(B, 1, Sk)
        bias = jnp.where(m == 0.0, jnp.float32(-1e30), jnp.float32(0.0))

    kern = functools.partial(fused_cross_attn_kernel,
                             num_heads=num_heads, head_dim=head_dim,
                             scale=scale, return_weights=return_weights)

    in_specs = [
        pl.BlockSpec((None, Sq, Dq), lambda b: (b, 0, 0)),   # x
        pl.BlockSpec((None, Sk, Dk), lambda b: (b, 0, 0)),   # context
        pl.BlockSpec((None, 1, Sk), lambda b: (b, 0, 0)),    # mask bias
        pl.BlockSpec((Dq, Dq), lambda b: (0, 0)),            # wq
        pl.BlockSpec((1, Dq), lambda b: (0, 0)),             # bq
        pl.BlockSpec((Dk, 2 * Dq), lambda b: (0, 0)),        # wkv
        pl.BlockSpec((1, 2 * Dq), lambda b: (0, 0)),         # bkv
        pl.BlockSpec((Dq, Dq), lambda b: (0, 0)),            # wo
        pl.BlockSpec((1, Dq), lambda b: (0, 0)),             # bo
    ]

    if return_weights:
        out_shape = (jax.ShapeDtypeStruct((B, Sq, Dq), jnp.float32),
                     jax.ShapeDtypeStruct((B, Sq, num_heads * Sk), jnp.float32))
        out_specs = (pl.BlockSpec((None, Sq, Dq), lambda b: (b, 0, 0)),
                     pl.BlockSpec((None, Sq, num_heads * Sk), lambda b: (b, 0, 0)))
    else:
        out_shape = jax.ShapeDtypeStruct((B, Sq, Dq), jnp.float32)
        out_specs = pl.BlockSpec((None, Sq, Dq), lambda b: (b, 0, 0))

    res = pl.pallas_call(
        kern,
        out_shape=out_shape,
        grid=(B,),
        in_specs=in_specs,
        out_specs=out_specs,
        compiler_params=pltpu.CompilerParams(
            dimension_semantics=("parallel",)),   # both TCs on v7x
    )(x, context, bias, params["wq"], bq, wkv, bkv, params["wo"], bo)

    if return_weights:
        out, attn_packed = res
        attn = attn_packed.reshape(B, Sq, num_heads, Sk).transpose(0, 2, 1, 3)
        return out, attn
    return res, None


# ----------------------------------------------------------------------------
# Params (deterministic init, weights as (in_features, out_features))
# ----------------------------------------------------------------------------

def init_params(key, query_dim, key_dim):
    ks = jax.random.split(key, 8)

    def lin(kw, kb, fan_in, fan_out):
        bound = 1.0 / math.sqrt(fan_in)
        w = jax.random.uniform(kw, (fan_in, fan_out), jnp.float32, -bound, bound)
        b = jax.random.uniform(kb, (fan_out,), jnp.float32, -bound, bound)
        return w, b

    wq, bq = lin(ks[0], ks[1], query_dim, query_dim)
    wk, bk = lin(ks[2], ks[3], key_dim, query_dim)
    wv, bv = lin(ks[4], ks[5], key_dim, query_dim)
    wo, bo = lin(ks[6], ks[7], query_dim, query_dim)
    return dict(wq=wq, bq=bq, wk=wk, bk=bk, wv=wv, bv=bv, wo=wo, bo=bo)


# ----------------------------------------------------------------------------
# Pure-JAX reference (verification only)
# ----------------------------------------------------------------------------

def reference_forward(x, context, params, num_heads, context_mask=None):
    B, Sq, Dq = x.shape
    _, Sk, Dk = context.shape
    head_dim = Dq // num_heads
    scale = head_dim ** (-0.5)
    q = x @ params["wq"] + params["bq"]
    k = context @ params["wk"] + params["bk"]
    v = context @ params["wv"] + params["bv"]
    q = q.reshape(B, Sq, num_heads, head_dim).transpose(0, 2, 1, 3)
    k = k.reshape(B, Sk, num_heads, head_dim).transpose(0, 2, 1, 3)
    v = v.reshape(B, Sk, num_heads, head_dim).transpose(0, 2, 1, 3)
    dots = jnp.einsum("bhqd,bhkd->bhqk", q, k) * scale
    if context_mask is not None:
        m = context_mask[:, None, None, :].astype(jnp.float32)
        dots = jnp.where(m == 0.0, -jnp.inf, dots)
    attn = jax.nn.softmax(dots, axis=-1)
    out = jnp.einsum("bhqk,bhkd->bhqd", attn, v)
    out = out.transpose(0, 2, 1, 3).reshape(B, Sq, Dq)
    return out @ params["wo"] + params["bo"], attn


# ----------------------------------------------------------------------------
# Main
# ----------------------------------------------------------------------------

if __name__ == "__main__":
    B, Sq, Sk = 2, 16, 8
    query_dim, key_dim, num_heads = 32, 24, 4

    key = jax.random.PRNGKey(0)
    kx, kc, kp = jax.random.split(key, 3)
    x = jax.random.normal(kx, (B, Sq, query_dim), jnp.float32)
    context = jax.random.normal(kc, (B, Sk, key_dim), jnp.float32)
    params = init_params(kp, query_dim, key_dim)

    # keep first 6 of 8 context tokens for batch 0, all for batch 1
    context_mask = jnp.array(
        [[1, 1, 1, 1, 1, 1, 0, 0],
         [1, 1, 1, 1, 1, 1, 1, 1]], dtype=jnp.float32
    )

    out, attn = cross_attention_forward(
        x, context, params, num_heads, context_mask, return_weights=True)
    out = jax.block_until_ready(out)
    attn = jax.block_until_ready(attn)

    # fast path without attention-weights output (exercise both variants)
    out_fast, _ = cross_attention_forward(
        x, context, params, num_heads, context_mask, return_weights=False)
    out_fast = jax.block_until_ready(out_fast)

    ref_out, ref_attn = reference_forward(x, context, params, num_heads, context_mask)

    assert out.shape == (B, Sq, query_dim)
    assert attn.shape == (B, num_heads, Sq, Sk)
    assert jnp.allclose(out, ref_out, atol=1e-4, rtol=1e-4)
    assert jnp.allclose(attn, ref_attn, atol=1e-4, rtol=1e-4)
    assert jnp.allclose(out_fast, ref_out, atol=1e-4, rtol=1e-4)

    print("KERNEL_OK")
</pallas_src>

<mosaic_0001>
module attributes {stable_mosaic.version = 11 : i64} {
  func.func @fused_cross_attn_kernel(%arg0: i32, %arg1: memref<1x16x32xf32, #tpu.memory_space<vmem>>, %arg2: memref<1x8x24xf32, #tpu.memory_space<vmem>>, %arg3: memref<1x1x8xf32, #tpu.memory_space<vmem>>, %arg4: memref<32x32xf32, #tpu.memory_space<vmem>>, %arg5: memref<1x32xf32, #tpu.memory_space<vmem>>, %arg6: memref<24x64xf32, #tpu.memory_space<vmem>>, %arg7: memref<1x64xf32, #tpu.memory_space<vmem>>, %arg8: memref<32x32xf32, #tpu.memory_space<vmem>>, %arg9: memref<1x32xf32, #tpu.memory_space<vmem>>, %arg10: memref<1x16x32xf32, #tpu.memory_space<vmem>>, %arg11: memref<1x16x32xf32, #tpu.memory_space<vmem>>) attributes {dimension_semantics = [#tpu.dimension_semantics<parallel>], iteration_bounds = array<i64: 2>, scalar_prefetch = 0 : i64, scratch_operands = 0 : i64, tpu.core_type = #tpu.core_type<tc>, window_params = [{transform_indices = @transform_0, window_bounds = array<i64: 1, 16, 32>}, {transform_indices = @transform_1, window_bounds = array<i64: 1, 8, 24>}, {transform_indices = @transform_2, window_bounds = array<i64: 1, 1, 8>}, {pipeline_mode = #tpu.pipeline_mode<synchronous>, transform_indices = @transform_3, window_bounds = array<i64: 32, 32>}, {pipeline_mode = #tpu.pipeline_mode<synchronous>, transform_indices = @transform_4, window_bounds = array<i64: 1, 32>}, {pipeline_mode = #tpu.pipeline_mode<synchronous>, transform_indices = @transform_5, window_bounds = array<i64: 24, 64>}, {pipeline_mode = #tpu.pipeline_mode<synchronous>, transform_indices = @transform_6, window_bounds = array<i64: 1, 64>}, {pipeline_mode = #tpu.pipeline_mode<synchronous>, transform_indices = @transform_7, window_bounds = array<i64: 32, 32>}, {pipeline_mode = #tpu.pipeline_mode<synchronous>, transform_indices = @transform_8, window_bounds = array<i64: 1, 32>}, {transform_indices = @transform_9, window_bounds = array<i64: 1, 16, 32>}, {transform_indices = @transform_10, window_bounds = array<i64: 1, 16, 32>}]} {
    %c0 = arith.constant 0 : index
    %c0_0 = arith.constant 0 : index
    %c0_1 = arith.constant 0 : index
    %0 = vector.load %arg1[%c0, %c0_0, %c0_1] : memref<1x16x32xf32, #tpu.memory_space<vmem>>, vector<1x16x32xf32>
    %1 = vector.shape_cast %0 : vector<1x16x32xf32> to vector<16x32xf32>
    %c0_2 = arith.constant 0 : index
    %c0_3 = arith.constant 0 : index
    %c0_4 = arith.constant 0 : index
    %2 = vector.load %arg2[%c0_2, %c0_3, %c0_4] : memref<1x8x24xf32, #tpu.memory_space<vmem>>, vector<1x8x24xf32>
    %3 = vector.shape_cast %2 : vector<1x8x24xf32> to vector<8x24xf32>
    %c0_5 = arith.constant 0 : index
    %c0_6 = arith.constant 0 : index
    %c0_7 = arith.constant 0 : index
    %4 = vector.load %arg3[%c0_5, %c0_6, %c0_7] : memref<1x1x8xf32, #tpu.memory_space<vmem>>, vector<1x1x8xf32>
    %5 = vector.shape_cast %4 : vector<1x1x8xf32> to vector<1x8xf32>
    %c0_8 = arith.constant 0 : index
    %c0_9 = arith.constant 0 : index
    %6 = vector.load %arg4[%c0_8, %c0_9] : memref<32x32xf32, #tpu.memory_space<vmem>>, vector<32x32xf32>
    %cst = arith.constant dense<0.000000e+00> : vector<16x32xf32>
    %7 = tpu.matmul %1, %6, %cst {dimension_numbers = #tpu.dot_dimension_numbers<[1], [0], [0], [1], [0, 0, 1, 1], [], []>} : vector<16x32xf32>, vector<32x32xf32>, vector<16x32xf32> -> vector<16x32xf32>
    %c0_10 = arith.constant 0 : index
    %c0_11 = arith.constant 0 : index
    %8 = vector.load %arg5[%c0_10, %c0_11] : memref<1x32xf32, #tpu.memory_space<vmem>>, vector<1x32xf32>
    %9 = vector.broadcast %8 : vector<1x32xf32> to vector<16x32xf32>
    %10 = arith.addf %7, %9 : vector<16x32xf32>
    %c0_12 = arith.constant 0 : index
    %c0_13 = arith.constant 0 : index
    %11 = vector.load %arg6[%c0_12, %c0_13] : memref<24x64xf32, #tpu.memory_space<vmem>>, vector<24x64xf32>
    %cst_14 = arith.constant dense<0.000000e+00> : vector<8x64xf32>
    %12 = tpu.matmul %3, %11, %cst_14 {dimension_numbers = #tpu.dot_dimension_numbers<[1], [0], [0], [1], [0, 0, 1, 1], [], []>} : vector<8x24xf32>, vector<24x64xf32>, vector<8x64xf32> -> vector<8x64xf32>
    %c0_15 = arith.constant 0 : index
    %c0_16 = arith.constant 0 : index
    %13 = vector.load %arg7[%c0_15, %c0_16] : memref<1x64xf32, #tpu.memory_space<vmem>>, vector<1x64xf32>
    %14 = vector.broadcast %13 : vector<1x64xf32> to vector<8x64xf32>
    %15 = arith.addf %12, %14 : vector<8x64xf32>
    %cst_17 = arith.constant 0.353553385 : f32
    %16 = vector.broadcast %cst_17 : f32 to vector<16x32xf32>
    %17 = arith.mulf %10, %16 : vector<16x32xf32>
    %18 = vector.extract_strided_slice %15 {offsets = [0, 0], sizes = [8, 32], strides = [1, 1]} : vector<8x64xf32> to vector<8x32xf32>
    %19 = vector.extract_strided_slice %15 {offsets = [0, 32], sizes = [8, 32], strides = [1, 1]} : vector<8x64xf32> to vector<8x32xf32>
    %20 = vector.extract_strided_slice %17 {offsets = [0, 0], sizes = [16, 8], strides = [1, 1]} : vector<16x32xf32> to vector<16x8xf32>
    %21 = vector.extract_strided_slice %18 {offsets = [0, 0], sizes = [8, 8], strides = [1, 1]} : vector<8x32xf32> to vector<8x8xf32>
    %22 = vector.extract_strided_slice %19 {offsets = [0, 0], sizes = [8, 8], strides = [1, 1]} : vector<8x32xf32> to vector<8x8xf32>
    %cst_18 = arith.constant dense<0.000000e+00> : vector<16x8xf32>
    %23 = tpu.matmul %20, %21, %cst_18 {dimension_numbers = #tpu.dot_dimension_numbers<[1], [1], [0], [0], [0, 0, 1, 0], [], []>} : vector<16x8xf32>, vector<8x8xf32>, vector<16x8xf32> -> vector<16x8xf32>
    %24 = vector.broadcast %5 : vector<1x8xf32> to vector<16x8xf32>
    %25 = arith.addf %23, %24 : vector<16x8xf32>
    %cst_19 = arith.constant dense<0xFF800000> : vector<16xf32>
    %26 = vector.multi_reduction <maximumf>, %25, %cst_19 [1] : vector<16x8xf32> to vector<16xf32>
    %27 = vector.shape_cast %26 : vector<16xf32> to vector<16x1xf32>
    %28 = vector.broadcast %27 : vector<16x1xf32> to vector<16x8xf32>
    %29 = arith.subf %25, %28 : vector<16x8xf32>
    %30 = math.exp %29 : vector<16x8xf32>
    %cst_20 = arith.constant dense<0.000000e+00> : vector<16xf32>
    %31 = vector.multi_reduction <add>, %30, %cst_20 [1] : vector<16x8xf32> to vector<16xf32>
    %32 = vector.shape_cast %31 : vector<16xf32> to vector<16x1xf32>
    %33 = tpu.reciprocal %32 {approx = true} : vector<16x1xf32> -> vector<16x1xf32>
    %34 = arith.mulf %32, %33 : vector<16x1xf32>
    %cst_21 = arith.constant 2.000000e+00 : f32
    %35 = vector.broadcast %cst_21 : f32 to vector<16x1xf32>
    %36 = arith.subf %35, %34 : vector<16x1xf32>
    %37 = arith.mulf %33, %36 : vector<16x1xf32>
    %38 = vector.broadcast %37 : vector<16x1xf32> to vector<16x8xf32>
    %39 = arith.mulf %30, %38 : vector<16x8xf32>
    %cst_22 = arith.constant dense<0.000000e+00> : vector<16x8xf32>
    %40 = tpu.matmul %39, %22, %cst_22 {dimension_numbers = #tpu.dot_dimension_numbers<[1], [0], [0], [1], [0, 0, 1, 1], [], []>} : vector<16x8xf32>, vector<8x8xf32>, vector<16x8xf32> -> vector<16x8xf32>
    %41 = vector.extract_strided_slice %17 {offsets = [0, 8], sizes = [16, 8], strides = [1, 1]} : vector<16x32xf32> to vector<16x8xf32>
    %42 = vector.extract_strided_slice %18 {offsets = [0, 8], sizes = [8, 8], strides = [1, 1]} : vector<8x32xf32> to vector<8x8xf32>
    %43 = vector.extract_strided_slice %19 {offsets = [0, 8], sizes = [8, 8], strides = [1, 1]} : vector<8x32xf32> to vector<8x8xf32>
    %cst_23 = arith.constant dense<0.000000e+00> : vector<16x8xf32>
    %44 = tpu.matmul %41, %42, %cst_23 {dimension_numbers = #tpu.dot_dimension_numbers<[1], [1], [0], [0], [0, 0, 1, 0], [], []>} : vector<16x8xf32>, vector<8x8xf32>, vector<16x8xf32> -> vector<16x8xf32>
    %45 = vector.broadcast %5 : vector<1x8xf32> to vector<16x8xf32>
    %46 = arith.addf %44, %45 : vector<16x8xf32>
    %cst_24 = arith.constant dense<0xFF800000> : vector<16xf32>
    %47 = vector.multi_reduction <maximumf>, %46, %cst_24 [1] : vector<16x8xf32> to vector<16xf32>
    %48 = vector.shape_cast %47 : vector<16xf32> to vector<16x1xf32>
    %49 = vector.broadcast %48 : vector<16x1xf32> to vector<16x8xf32>
    %50 = arith.subf %46, %49 : vector<16x8xf32>
    %51 = math.exp %50 : vector<16x8xf32>
    %cst_25 = arith.constant dense<0.000000e+00> : vector<16xf32>
    %52 = vector.multi_reduction <add>, %51, %cst_25 [1] : vector<16x8xf32> to vector<16xf32>
    %53 = vector.shape_cast %52 : vector<16xf32> to vector<16x1xf32>
    %54 = tpu.reciprocal %53 {approx = true} : vector<16x1xf32> -> vector<16x1xf32>
    %55 = arith.mulf %53, %54 : vector<16x1xf32>
    %cst_26 = arith.constant 2.000000e+00 : f32
    %56 = vector.broadcast %cst_26 : f32 to vector<16x1xf32>
    %57 = arith.subf %56, %55 : vector<16x1xf32>
    %58 = arith.mulf %54, %57 : vector<16x1xf32>
    %59 = vector.broadcast %58 : vector<16x1xf32> to vector<16x8xf32>
    %60 = arith.mulf %51, %59 : vector<16x8xf32>
    %cst_27 = arith.constant dense<0.000000e+00> : vector<16x8xf32>
    %61 = tpu.matmul %60, %43, %cst_27 {dimension_numbers = #tpu.dot_dimension_numbers<[1], [0], [0], [1], [0, 0, 1, 1], [], []>} : vector<16x8xf32>, vector<8x8xf32>, vector<16x8xf32> -> vector<16x8xf32>
    %62 = vector.extract_strided_slice %17 {offsets = [0, 16], sizes = [16, 8], strides = [1, 1]} : vector<16x32xf32> to vector<16x8xf32>
    %63 = vector.extract_strided_slice %18 {offsets = [0, 16], sizes = [8, 8], strides = [1, 1]} : vector<8x32xf32> to vector<8x8xf32>
    %64 = vector.extract_strided_slice %19 {offsets = [0, 16], sizes = [8, 8], strides = [1, 1]} : vector<8x32xf32> to vector<8x8xf32>
    %cst_28 = arith.constant dense<0.000000e+00> : vector<16x8xf32>
    %65 = tpu.matmul %62, %63, %cst_28 {dimension_numbers = #tpu.dot_dimension_numbers<[1], [1], [0], [0], [0, 0, 1, 0], [], []>} : vector<16x8xf32>, vector<8x8xf32>, vector<16x8xf32> -> vector<16x8xf32>
    %66 = vector.broadcast %5 : vector<1x8xf32> to vector<16x8xf32>
    %67 = arith.addf %65, %66 : vector<16x8xf32>
    %cst_29 = arith.constant dense<0xFF800000> : vector<16xf32>
    %68 = vector.multi_reduction <maximumf>, %67, %cst_29 [1] : vector<16x8xf32> to vector<16xf32>
    %69 = vector.shape_cast %68 : vector<16xf32> to vector<16x1xf32>
    %70 = vector.broadcast %69 : vector<16x1xf32> to vector<16x8xf32>
    %71 = arith.subf %67, %70 : vector<16x8xf32>
    %72 = math.exp %71 : vector<16x8xf32>
    %cst_30 = arith.constant dense<0.000000e+00> : vector<16xf32>
    %73 = vector.multi_reduction <add>, %72, %cst_30 [1] : vector<16x8xf32> to vector<16xf32>
    %74 = vector.shape_cast %73 : vector<16xf32> to vector<16x1xf32>
    %75 = tpu.reciprocal %74 {approx = true} : vector<16x1xf32> -> vector<16x1xf32>
    %76 = arith.mulf %74, %75 : vector<16x1xf32>
    %cst_31 = arith.constant 2.000000e+00 : f32
    %77 = vector.broadcast %cst_31 : f32 to vector<16x1xf32>
    %78 = arith.subf %77, %76 : vector<16x1xf32>
    %79 = arith.mulf %75, %78 : vector<16x1xf32>
    %80 = vector.broadcast %79 : vector<16x1xf32> to vector<16x8xf32>
    %81 = arith.mulf %72, %80 : vector<16x8xf32>
    %cst_32 = arith.constant dense<0.000000e+00> : vector<16x8xf32>
    %82 = tpu.matmul %81, %64, %cst_32 {dimension_numbers = #tpu.dot_dimension_numbers<[1], [0], [0], [1], [0, 0, 1, 1], [], []>} : vector<16x8xf32>, vector<8x8xf32>, vector<16x8xf32> -> vector<16x8xf32>
    %83 = vector.extract_strided_slice %17 {offsets = [0, 24], sizes = [16, 8], strides = [1, 1]} : vector<16x32xf32> to vector<16x8xf32>
    %84 = vector.extract_strided_slice %18 {offsets = [0, 24], sizes = [8, 8], strides = [1, 1]} : vector<8x32xf32> to vector<8x8xf32>
    %85 = vector.extract_strided_slice %19 {offsets = [0, 24], sizes = [8, 8], strides = [1, 1]} : vector<8x32xf32> to vector<8x8xf32>
    %cst_33 = arith.constant dense<0.000000e+00> : vector<16x8xf32>
    %86 = tpu.matmul %83, %84, %cst_33 {dimension_numbers = #tpu.dot_dimension_numbers<[1], [1], [0], [0], [0, 0, 1, 0], [], []>} : vector<16x8xf32>, vector<8x8xf32>, vector<16x8xf32> -> vector<16x8xf32>
    %87 = vector.broadcast %5 : vector<1x8xf32> to vector<16x8xf32>
    %88 = arith.addf %86, %87 : vector<16x8xf32>
    %cst_34 = arith.constant dense<0xFF800000> : vector<16xf32>
    %89 = vector.multi_reduction <maximumf>, %88, %cst_34 [1] : vector<16x8xf32> to vector<16xf32>
    %90 = vector.shape_cast %89 : vector<16xf32> to vector<16x1xf32>
    %91 = vector.broadcast %90 : vector<16x1xf32> to vector<16x8xf32>
    %92 = arith.subf %88, %91 : vector<16x8xf32>
    %93 = math.exp %92 : vector<16x8xf32>
    %cst_35 = arith.constant dense<0.000000e+00> : vector<16xf32>
    %94 = vector.multi_reduction <add>, %93, %cst_35 [1] : vector<16x8xf32> to vector<16xf32>
    %95 = vector.shape_cast %94 : vector<16xf32> to vector<16x1xf32>
    %96 = tpu.reciprocal %95 {approx = true} : vector<16x1xf32> -> vector<16x1xf32>
    %97 = arith.mulf %95, %96 : vector<16x1xf32>
    %cst_36 = arith.constant 2.000000e+00 : f32
    %98 = vector.broadcast %cst_36 : f32 to vector<16x1xf32>
    %99 = arith.subf %98, %97 : vector<16x1xf32>
    %100 = arith.mulf %96, %99 : vector<16x1xf32>
    %101 = vector.broadcast %100 : vector<16x1xf32> to vector<16x8xf32>
    %102 = arith.mulf %93, %101 : vector<16x8xf32>
    %cst_37 = arith.constant dense<0.000000e+00> : vector<16x8xf32>
    %103 = tpu.matmul %102, %85, %cst_37 {dimension_numbers = #tpu.dot_dimension_numbers<[1], [0], [0], [1], [0, 0, 1, 1], [], []>} : vector<16x8xf32>, vector<8x8xf32>, vector<16x8xf32> -> vector<16x8xf32>
    %104 = tpu.concatenate %40, %61, %82, %103 in 1 : vector<16x8xf32>, vector<16x8xf32>, vector<16x8xf32>, vector<16x8xf32> -> vector<16x32xf32>
    %c0_38 = arith.constant 0 : index
    %c0_39 = arith.constant 0 : index
    %105 = vector.load %arg8[%c0_38, %c0_39] : memref<32x32xf32, #tpu.memory_space<vmem>>, vector<32x32xf32>
    %cst_40 = arith.constant dense<0.000000e+00> : vector<16x32xf32>
    %106 = tpu.matmul %104, %105, %cst_40 {dimension_numbers = #tpu.dot_dimension_numbers<[1], [0], [0], [1], [0, 0, 1, 1], [], []>} : vector<16x32xf32>, vector<32x32xf32>, vector<16x32xf32> -> vector<16x32xf32>
    %c0_41 = arith.constant 0 : index
    %c0_42 = arith.constant 0 : index
    %107 = vector.load %arg9[%c0_41, %c0_42] : memref<1x32xf32, #tpu.memory_space<vmem>>, vector<1x32xf32>
    %108 = vector.broadcast %107 : vector<1x32xf32> to vector<16x32xf32>
    %109 = arith.addf %106, %108 : vector<16x32xf32>
    %c0_43 = arith.constant 0 : index
    %c0_44 = arith.constant 0 : index
    %c0_45 = arith.constant 0 : index
    %110 = vector.load %arg10[%c0_43, %c0_44, %c0_45] : memref<1x16x32xf32, #tpu.memory_space<vmem>>, vector<1x16x32xf32>
    %111 = vector.shape_cast %110 : vector<1x16x32xf32> to vector<16x32xf32>
    %112 = vector.shape_cast %109 : vector<16x32xf32> to vector<1x16x32xf32>
    tpu.vector_store %arg10[%c0_43, %c0_44, %c0_45], %112 {strides = array<i32>} : memref<1x16x32xf32, #tpu.memory_space<vmem>>, vector<1x16x32xf32>,
    %113 = tpu.concatenate %39, %60, %81, %102 in 1 : vector<16x8xf32>, vector<16x8xf32>, vector<16x8xf32>, vector<16x8xf32> -> vector<16x32xf32>
    %c0_46 = arith.constant 0 : index
    %c0_47 = arith.constant 0 : index
    %c0_48 = arith.constant 0 : index
    %114 = vector.load %arg11[%c0_46, %c0_47, %c0_48] : memref<1x16x32xf32, #tpu.memory_space<vmem>>, vector<1x16x32xf32>
    %115 = vector.shape_cast %114 : vector<1x16x32xf32> to vector<16x32xf32>
    %116 = vector.shape_cast %113 : vector<16x32xf32> to vector<1x16x32xf32>
    tpu.vector_store %arg11[%c0_46, %c0_47, %c0_48], %116 {strides = array<i32>} : memref<1x16x32xf32, #tpu.memory_space<vmem>>, vector<1x16x32xf32>,
    return
  }
  func.func @transform_0(%arg0: i32) -> (i32, i32, i32) {
    %c0_i32 = arith.constant 0 : i32
    %c0_i32_0 = arith.constant 0 : i32
    %c0_i32_1 = arith.constant 0 : i32
    return %arg0, %c0_i32, %c0_i32_0 : i32, i32, i32
  }
  func.func @transform_1(%arg0: i32) -> (i32, i32, i32) {
    %c0_i32 = arith.constant 0 : i32
    %c0_i32_0 = arith.constant 0 : i32
    %c0_i32_1 = arith.constant 0 : i32
    return %arg0, %c0_i32, %c0_i32_0 : i32, i32, i32
  }
  func.func @transform_2(%arg0: i32) -> (i32, i32, i32) {
    %c0_i32 = arith.constant 0 : i32
    %c0_i32_0 = arith.constant 0 : i32
    %c0_i32_1 = arith.constant 0 : i32
    return %arg0, %c0_i32, %c0_i32_0 : i32, i32, i32
  }
  func.func @transform_3(%arg0: i32) -> (i32, i32) {
    %c0_i32 = arith.constant 0 : i32
    %c0_i32_0 = arith.constant 0 : i32
    %c0_i32_1 = arith.constant 0 : i32
    return %c0_i32, %c0_i32_0 : i32, i32
  }
  func.func @transform_4(%arg0: i32) -> (i32, i32) {
    %c0_i32 = arith.constant 0 : i32
    %c0_i32_0 = arith.constant 0 : i32
    %c0_i32_1 = arith.constant 0 : i32
    return %c0_i32, %c0_i32_0 : i32, i32
  }
  func.func @transform_5(%arg0: i32) -> (i32, i32) {
    %c0_i32 = arith.constant 0 : i32
    %c0_i32_0 = arith.constant 0 : i32
    %c0_i32_1 = arith.constant 0 : i32
    return %c0_i32, %c0_i32_0 : i32, i32
  }
  func.func @transform_6(%arg0: i32) -> (i32, i32) {
    %c0_i32 = arith.constant 0 : i32
    %c0_i32_0 = arith.constant 0 : i32
    %c0_i32_1 = arith.constant 0 : i32
    return %c0_i32, %c0_i32_0 : i32, i32
  }
  func.func @transform_7(%arg0: i32) -> (i32, i32) {
    %c0_i32 = arith.constant 0 : i32
    %c0_i32_0 = arith.constant 0 : i32
    %c0_i32_1 = arith.constant 0 : i32
    return %c0_i32, %c0_i32_0 : i32, i32
  }
  func.func @transform_8(%arg0: i32) -> (i32, i32) {
    %c0_i32 = arith.constant 0 : i32
    %c0_i32_0 = arith.constant 0 : i32
    %c0_i32_1 = arith.constant 0 : i32
    return %c0_i32, %c0_i32_0 : i32, i32
  }
  func.func @transform_9(%arg0: i32) -> (i32, i32, i32) {
    %c0_i32 = arith.constant 0 : i32
    %c0_i32_0 = arith.constant 0 : i32
    %c0_i32_1 = arith.constant 0 : i32
    return %arg0, %c0_i32, %c0_i32_0 : i32, i32, i32
  }
  func.func @transform_10(%arg0: i32) -> (i32, i32, i32) {
    %c0_i32 = arith.constant 0 : i32
    %c0_i32_0 = arith.constant 0 : i32
    %c0_i32_1 = arith.constant 0 : i32
    return %arg0, %c0_i32, %c0_i32_0 : i32, i32, i32
  }
}

</mosaic_0001>

<llo_original>
// kernel: tpu_custom_call.1
$region0: #{tpu_custom_call.1}
  #allocation0 [shape = 'u32[]', space=smem, size = 0x4, offset = 0x4, fixed_abs, tag = 'smem constant byte address 0x4 - core index']
  #allocation1 [shape = 'u32[144,128]{1,0:T(1,128)}', space=vmem, size = 0x12000, scoped, tag = 'internal scratch']
  %s0 = inlined_call_operand.hbm [shape: f32[2,16,32], index: 0, kind: input, shape index: {}]
  %s1 = inlined_call_operand.hbm [shape: f32[2,8,24], index: 1, kind: input, shape index: {}]
  %s2 = inlined_call_operand.vmem [shape: f32[2,1,8], index: 2, kind: input, shape index: {}]
  %s3 = inlined_call_operand.hbm [shape: f32[32,32], index: 3, kind: input, shape index: {}]
  %s4 = inlined_call_operand.vmem [shape: f32[1,32], index: 4, kind: input, shape index: {}]
  %s5 = inlined_call_operand.hbm [shape: f32[24,64], index: 5, kind: input, shape index: {}]
  %s6 = inlined_call_operand.vmem [shape: f32[1,64], index: 6, kind: input, shape index: {}]
  %s7 = inlined_call_operand.hbm [shape: f32[32,32], index: 7, kind: input, shape index: {}]
  %s8 = inlined_call_operand.vmem [shape: f32[1,32], index: 8, kind: input, shape index: {}]
  %s9 = inlined_call_operand.hbm [shape: f32[2,16,32], index: 9, kind: output, shape index: {0}]
  %s10 = inlined_call_operand.hbm [shape: f32[2,16,32], index: 10, kind: output, shape index: {1}]
  %11 = xla_tuple %s9, %s10
  %s12 = sld [smem:[#allocation0]]
  $region97: #{tpu_custom_call.1} parent=0
    _
  %s14 = ssub.s32 1, %s12
  %s15 = scalar_select 0, %s14, %s12
  $region1: #{tpu_custom_call.1} parent=0
    #allocation2 [shape = 'u8[16384]{0}', space=vmem, size = 0x4000, scoped, tag = 'input window, operand 0']
    #allocation3 [shape = 's32[2]{0}', space=sflag, size = 0x8, scoped, tag = 'scoped memory for tpu_custom_call.1']
    #allocation4 [shape = 's32[2]{0}', space=sflag, size = 0x8, scoped, tag = 'scoped memory for tpu_custom_call.1']
    #allocation5 [shape = 'u8[8192]{0}', space=vmem, size = 0x2000, scoped, tag = 'input window, operand 1']
    #allocation6 [shape = 's32[2]{0}', space=sflag, size = 0x8, scoped, tag = 'scoped memory for tpu_custom_call.1']
    #allocation7 [shape = 'u8[16384]{0}', space=vmem, size = 0x4000, scoped, tag = 'input window, operand 3, single buffered']
    #allocation8 [shape = 'u8[12288]{0}', space=vmem, size = 0x3000, scoped, tag = 'input window, operand 5, single buffered']
    #allocation9 [shape = 's32[1]{0}', space=sflag, size = 0x4, scoped, tag = 'scoped memory for tpu_custom_call.1']
    #allocation10 [shape = 'u8[16384]{0}', space=vmem, size = 0x4000, scoped, tag = 'input window, operand 7, single buffered']
    #allocation11 [shape = 'u8[16384]{0}', space=vmem, size = 0x4000, scoped, tag = 'output window, operand 0']
    #allocation12 [shape = 'u8[16384]{0}', space=vmem, size = 0x4000, scoped, tag = 'output window, operand 1']
    #allocation13 [shape = 's32[2]{0}', space=sflag, size = 0x8, scoped, tag = 'scoped memory for tpu_custom_call.1']
    %16 = vsyncpa [#allocation3], 0
    %s17 = scalar_lea.sflag [#allocation3], 1
    %18 = vsyncpa %s17, 0
    %19 = vsyncpa [#allocation6], 0
    %s20 = scalar_lea.sflag [#allocation6], 1
    %21 = vsyncpa %s20, 0
    %22 = vsyncpa [#allocation9], 0
    %23 = vsyncpa [#allocation4], 0
    %s24 = scalar_lea.sflag [#allocation4], 1
    %25 = vsyncpa %s24, 0
    %26 = vsyncpa [#allocation13], 0
    %s27 = scalar_lea.sflag [#allocation13], 1
    %28 = vsyncpa %s27, 0
    loop: start=0, step=1, limit=4
    $region2: #{tpu_custom_call.1} parent=1 // loop_pre_header
      _
    $region3: #{tpu_custom_call.1} parent=1 // loop_header
      %s30 = sphi 0, %s34
      %p31 = scmp.ge.s32.totalorder %s30, 4
      %s40 = sphi 0, %s42
      %s43 = sphi 0, %s40
      %s44 = sphi 0, %s43
      %s60 = sphi 0, %s44
      %s66 = sphi 0, %s68
      %s69 = sphi 0, %s66
      %s70 = sphi 0, %s69
      %s86 = sphi 0, %s70
      %s92 = sphi 0, %s94
      %s95 = sphi 0, %s92
      %s96 = sphi 0, %s95
      %s112 = sphi 0, %s96
      %s116 = sphi 0, %s116
      %s118 = sphi 0, %s116
      %s119 = sphi 0, %s118
      %s133 = sphi 0, %s119
      %s137 = sphi 0, %s137
      %s139 = sphi 0, %s137
      %s140 = sphi 0, %s139
      %s154 = sphi 0, %s140
      %s158 = sphi 0, %s158
      %s160 = sphi 0, %s158
      %s161 = sphi 0, %s160
      %s175 = sphi 0, %s161
      %s179 = sphi 0, %s179
      %s181 = sphi 0, %s179
      %s182 = sphi 0, %s181
      %s196 = sphi 0, %s182
      %s200 = sphi 0, %s200
      %s202 = sphi 0, %s200
      %s203 = sphi 0, %s202
      %s217 = sphi 0, %s203
      %s221 = sphi 0, %s221
      %s223 = sphi 0, %s221
      %s224 = sphi 0, %s223
      %s238 = sphi 0, %s224
      %s244 = sphi 0, %s246
      %s247 = sphi 0, %s244
      %s248 = sphi 0, %s247
      %s264 = sphi 0, %s248
      %s270 = sphi 0, %s272
      %s273 = sphi 0, %s270
      %s274 = sphi 0, %s273
      %s290 = sphi 0, %s274
    $region4: #{tpu_custom_call.1} parent=1 // loop_header_branch
      %33 = sbr.rel (%p31) target = $region8
    $region5: #{tpu_custom_call.1} parent=1 // loop_body
      %s35 = ssub.s32 %s30, 1
      %s36 = ssub.s32 %s30, 2
      %s37 = sadd.s32 %s30, 1
      %s38 = ssub.s32 %s30, %s37
      %p39 = scmp.eq.s32.totalorder %s38, 0
      %s41 = sadd.s32 %s40, 1
      %s42 = scalar_select %p39, %s40, %s41
      %p45 = pneg %p39
      %p46 = scmp.eq.s32.totalorder %s30, 1
      %p47 = por %p45, %p46
      %p48 = scmp.ne.s32.totalorder %s40, %s43
      %p49 = scmp.eq.s32.totalorder %s30, 0
      %p50 = por %p48, %p49
      %p51 = scmp.ne.s32.totalorder %s40, %s43
      %p52 = scmp.eq.s32.totalorder %s35, 1
      %p53 = por %p51, %p52
      %p54 = scmp.ne.s32.totalorder %s43, %s44
      %p55 = scmp.eq.s32.totalorder %s35, 0
      %p56 = por %p54, %p55
      %p57 = scmp.ne.s32.totalorder %s43, %s44
      %p58 = scmp.eq.s32.totalorder %s36, 1
      %p59 = por %p57, %p58
      %p61 = scmp.ne.s32.totalorder %s44, %s60
      %p62 = scmp.eq.s32.totalorder %s36, 0
      %p63 = por %p61, %p62
      %s64 = ssub.s32 %s30, %s37
      %p65 = scmp.eq.s32.totalorder %s64, 0
      %s67 = sadd.s32 %s66, 1
      %s68 = scalar_select %p65, %s66, %s67
      %p71 = pneg %p65
      %p72 = scmp.eq.s32.totalorder %s30, 1
      %p73 = por %p71, %p72
      %p74 = scmp.ne.s32.totalorder %s66, %s69
      %p75 = scmp.eq.s32.totalorder %s30, 0
      %p76 = por %p74, %p75
      %p77 = scmp.ne.s32.totalorder %s66, %s69
      %p78 = scmp.eq.s32.totalorder %s35, 1
      %p79 = por %p77, %p78
      %p80 = scmp.ne.s32.totalorder %s69, %s70
      %p81 = scmp.eq.s32.totalorder %s35, 0
      %p82 = por %p80, %p81
      %p83 = scmp.ne.s32.totalorder %s69, %s70
      %p84 = scmp.eq.s32.totalorder %s36, 1
      %p85 = por %p83, %p84
      %p87 = scmp.ne.s32.totalorder %s70, %s86
      %p88 = scmp.eq.s32.totalorder %s36, 0
      %p89 = por %p87, %p88
      %s90 = ssub.s32 %s30, %s37
      %p91 = scmp.eq.s32.totalorder %s90, 0
      %s93 = sadd.s32 %s92, 1
      %s94 = scalar_select %p91, %s92, %s93
      %p97 = pneg %p91
      %p98 = scmp.eq.s32.totalorder %s30, 1
      %p99 = por %p97, %p98
      %p100 = scmp.ne.s32.totalorder %s92, %s95
      %p101 = scmp.eq.s32.totalorder %s30, 0
      %p102 = por %p100, %p101
      %p103 = scmp.ne.s32.totalorder %s92, %s95
      %p104 = scmp.eq.s32.totalorder %s35, 1
      %p105 = por %p103, %p104
      %p106 = scmp.ne.s32.totalorder %s95, %s96
      %p107 = scmp.eq.s32.totalorder %s35, 0
      %p108 = por %p106, %p107
      %p109 = scmp.ne.s32.totalorder %s95, %s96
      %p110 = scmp.eq.s32.totalorder %s36, 1
      %p111 = por %p109, %p110
      %p113 = scmp.ne.s32.totalorder %s96, %s112
      %p114 = scmp.eq.s32.totalorder %s36, 0
      %p115 = por %p113, %p114
      %s117 = sadd.s32 %s116, 1
      %p120 = scmp.eq.s32.totalorder %s30, 1
      %p121 = scmp.ne.s32.totalorder %s116, %s118
      %p122 = scmp.eq.s32.totalorder %s30, 0
      %p123 = por %p121, %p122
      %p124 = scmp.ne.s32.totalorder %s116, %s118
      %p125 = scmp.eq.s32.totalorder %s35, 1
      %p126 = por %p124, %p125
      %p127 = scmp.ne.s32.totalorder %s118, %s119
      %p128 = scmp.eq.s32.totalorder %s35, 0
      %p129 = por %p127, %p128
      %p130 = scmp.ne.s32.totalorder %s118, %s119
      %p131 = scmp.eq.s32.totalorder %s36, 1
      %p132 = por %p130, %p131
      %p134 = scmp.ne.s32.totalorder %s119, %s133
      %p135 = scmp.eq.s32.totalorder %s36, 0
      %p136 = por %p134, %p135
      %s138 = sadd.s32 %s137, 1
      %p141 = scmp.eq.s32.totalorder %s30, 1
      %p142 = scmp.ne.s32.totalorder %s137, %s139
      %p143 = scmp.eq.s32.totalorder %s30, 0
      %p144 = por %p142, %p143
      %p145 = scmp.ne.s32.totalorder %s137, %s139
      %p146 = scmp.eq.s32.totalorder %s35, 1
      %p147 = por %p145, %p146
      %p148 = scmp.ne.s32.totalorder %s139, %s140
      %p149 = scmp.eq.s32.totalorder %s35, 0
      %p150 = por %p148, %p149
      %p151 = scmp.ne.s32.totalorder %s139, %s140
      %p152 = scmp.eq.s32.totalorder %s36, 1
      %p153 = por %p151, %p152
      %p155 = scmp.ne.s32.totalorder %s140, %s154
      %p156 = scmp.eq.s32.totalorder %s36, 0
      %p157 = por %p155, %p156
      %s159 = sadd.s32 %s158, 1
      %p162 = scmp.eq.s32.totalorder %s30, 1
      %p163 = scmp.ne.s32.totalorder %s158, %s160
      %p164 = scmp.eq.s32.totalorder %s30, 0
      %p165 = por %p163, %p164
      %p166 = scmp.ne.s32.totalorder %s158, %s160
      %p167 = scmp.eq.s32.totalorder %s35, 1
      %p168 = por %p166, %p167
      %p169 = scmp.ne.s32.totalorder %s160, %s161
      %p170 = scmp.eq.s32.totalorder %s35, 0
      %p171 = por %p169, %p170
      %p172 = scmp.ne.s32.totalorder %s160, %s161
      %p173 = scmp.eq.s32.totalorder %s36, 1
      %p174 = por %p172, %p173
      %p176 = scmp.ne.s32.totalorder %s161, %s175
      %p177 = scmp.eq.s32.totalorder %s36, 0
      %p178 = por %p176, %p177
      %s180 = sadd.s32 %s179, 1
      %p183 = scmp.eq.s32.totalorder %s30, 1
      %p184 = scmp.ne.s32.totalorder %s179, %s181
      %p185 = scmp.eq.s32.totalorder %s30, 0
      %p186 = por %p184, %p185
      %p187 = scmp.ne.s32.totalorder %s179, %s181
      %p188 = scmp.eq.s32.totalorder %s35, 1
      %p189 = por %p187, %p188
      %p190 = scmp.ne.s32.totalorder %s181, %s182
      %p191 = scmp.eq.s32.totalorder %s35, 0
      %p192 = por %p190, %p191
      %p193 = scmp.ne.s32.totalorder %s181, %s182
      %p194 = scmp.eq.s32.totalorder %s36, 1
      %p195 = por %p193, %p194
      %p197 = scmp.ne.s32.totalorder %s182, %s196
      %p198 = scmp.eq.s32.totalorder %s36, 0
      %p199 = por %p197, %p198
      %s201 = sadd.s32 %s200, 1
      %p204 = scmp.eq.s32.totalorder %s30, 1
      %p205 = scmp.ne.s32.totalorder %s200, %s202
      %p206 = scmp.eq.s32.totalorder %s30, 0
      %p207 = por %p205, %p206
      %p208 = scmp.ne.s32.totalorder %s200, %s202
      %p209 = scmp.eq.s32.totalorder %s35, 1
      %p210 = por %p208, %p209
      %p211 = scmp.ne.s32.totalorder %s202, %s203
      %p212 = scmp.eq.s32.totalorder %s35, 0
      %p213 = por %p211, %p212
      %p214 = scmp.ne.s32.totalorder %s202, %s203
      %p215 = scmp.eq.s32.totalorder %s36, 1
      %p216 = por %p214, %p215
      %p218 = scmp.ne.s32.totalorder %s203, %s217
      %p219 = scmp.eq.s32.totalorder %s36, 0
      %p220 = por %p218, %p219
      %s222 = sadd.s32 %s221, 1
      %p225 = scmp.eq.s32.totalorder %s30, 1
      %p226 = scmp.ne.s32.totalorder %s221, %s223
      %p227 = scmp.eq.s32.totalorder %s30, 0
      %p228 = por %p226, %p227
      %p229 = scmp.ne.s32.totalorder %s221, %s223
      %p230 = scmp.eq.s32.totalorder %s35, 1
      %p231 = por %p229, %p230
      %p232 = scmp.ne.s32.totalorder %s223, %s224
      %p233 = scmp.eq.s32.totalorder %s35, 0
      %p234 = por %p232, %p233
      %p235 = scmp.ne.s32.totalorder %s223, %s224
      %p236 = scmp.eq.s32.totalorder %s36, 1
      %p237 = por %p235, %p236
      %p239 = scmp.ne.s32.totalorder %s224, %s238
      %p240 = scmp.eq.s32.totalorder %s36, 0
      %p241 = por %p239, %p240
      %s242 = ssub.s32 %s30, %s37
      %p243 = scmp.eq.s32.totalorder %s242, 0
      %s245 = sadd.s32 %s244, 1
      %s246 = scalar_select %p243, %s244, %s245
      %p249 = pneg %p243
      %p250 = scmp.eq.s32.totalorder %s30, 1
      %p251 = por %p249, %p250
      %p252 = scmp.ne.s32.totalorder %s244, %s247
      %p253 = scmp.eq.s32.totalorder %s30, 0
      %p254 = por %p252, %p253
      %p255 = scmp.ne.s32.totalorder %s244, %s247
      %p256 = scmp.eq.s32.totalorder %s35, 1
      %p257 = por %p255, %p256
      %p258 = scmp.ne.s32.totalorder %s247, %s248
      %p259 = scmp.eq.s32.totalorder %s35, 0
      %p260 = por %p258, %p259
      %p261 = scmp.ne.s32.totalorder %s247, %s248
      %p262 = scmp.eq.s32.totalorder %s36, 1
      %p263 = por %p261, %p262
      %p265 = scmp.ne.s32.totalorder %s248, %s264
      %p266 = scmp.eq.s32.totalorder %s36, 0
      %p267 = por %p265, %p266
      %s268 = ssub.s32 %s30, %s37
      %p269 = scmp.eq.s32.totalorder %s268, 0
      %s271 = sadd.s32 %s270, 1
      %s272 = scalar_select %p269, %s270, %s271
      %p275 = pneg %p269
      %p276 = scmp.eq.s32.totalorder %s30, 1
      %p277 = por %p275, %p276
      %p278 = scmp.ne.s32.totalorder %s270, %s273
      %p279 = scmp.eq.s32.totalorder %s30, 0
      %p280 = por %p278, %p279
      %p281 = scmp.ne.s32.totalorder %s270, %s273
      %p282 = scmp.eq.s32.totalorder %s35, 1
      %p283 = por %p281, %p282
      %p284 = scmp.ne.s32.totalorder %s273, %s274
      %p285 = scmp.eq.s32.totalorder %s35, 0
      %p286 = por %p284, %p285
      %p287 = scmp.ne.s32.totalorder %s273, %s274
      %p288 = scmp.eq.s32.totalorder %s36, 1
      %p289 = por %p287, %p288
      %p291 = scmp.ne.s32.totalorder %s274, %s290
      %p292 = scmp.eq.s32.totalorder %s36, 0
      %p293 = por %p291, %p292
      %p294 = scmp.le.s32.totalorder 1, %s30
      %p295 = scmp.lt.s32.totalorder %s30, 3
      %p296 = pnand %p294, %p295
      %p297 = pneg %p296
      // Predicated region
      $region9: #{tpu_custom_call.1} parent=5 // pred_check
        _
      $region10: #{tpu_custom_call.1} parent=5 // pred_check_branch
        %299 = sbr.rel (%p296) target = $region12
      $region11: #{tpu_custom_call.1} parent=5 // pred_region
        %s300 = ssub.s32 %s30, 1
        // Predicated region
        $region13: #{tpu_custom_call.1} parent=11 // pred_check
          %p301 = pneg %p129
        $region14: #{tpu_custom_call.1} parent=11 // pred_check_branch
          %303 = sbr.rel (%p301) target = $region16
        $region15: #{tpu_custom_call.1} parent=11 // pred_region
          %s305 = ssub.s32 512, 512
          %306 = vsyncadd [#allocation6], %s305
          %s307 = sshll.u32 [#allocation7], 4
          %s308 = int_to_ptr.vmem [resolvable:$true] %s307
          %313 = dma.hbm_to_vmem [thread:$0]  %s3, 512, %s308, [#allocation6], 128, 128, 8
        $region16: #{tpu_custom_call.1} parent=11 // pred_fallthru
          _
        // Predicated region
        $region17: #{tpu_custom_call.1} parent=11 // pred_check
          %p314 = pneg %p150
        $region18: #{tpu_custom_call.1} parent=11 // pred_check_branch
          %316 = sbr.rel (%p314) target = $region20
        $region19: #{tpu_custom_call.1} parent=11 // pred_region
          _
        $region20: #{tpu_custom_call.1} parent=11 // pred_fallthru
          _
        // Predicated region
        $region21: #{tpu_custom_call.1} parent=11 // pred_check
          %p317 = pneg %p171
        $region22: #{tpu_custom_call.1} parent=11 // pred_check_branch
          %319 = sbr.rel (%p317) target = $region24
        $region23: #{tpu_custom_call.1} parent=11 // pred_region
          %s321 = ssub.s32 384, 384
          %322 = vsyncadd [#allocation9], %s321
          %s323 = sshll.u32 [#allocation8], 4
          %s324 = int_to_ptr.vmem [resolvable:$true] %s323
          %329 = dma.hbm_to_vmem [thread:$0]  %s5, 384, %s324, [#allocation9], 128, 128, 8
        $region24: #{tpu_custom_call.1} parent=11 // pred_fallthru
          _
        // Predicated region
        $region25: #{tpu_custom_call.1} parent=11 // pred_check
          %p330 = pneg %p192
        $region26: #{tpu_custom_call.1} parent=11 // pred_check_branch
          %332 = sbr.rel (%p330) target = $region28
        $region27: #{tpu_custom_call.1} parent=11 // pred_region
          _
        $region28: #{tpu_custom_call.1} parent=11 // pred_fallthru
          _
        // Predicated region
        $region29: #{tpu_custom_call.1} parent=11 // pred_check
          %p333 = pneg %p213
        $region30: #{tpu_custom_call.1} parent=11 // pred_check_branch
          %335 = sbr.rel (%p333) target = $region32
        $region31: #{tpu_custom_call.1} parent=11 // pred_region
          %s337 = ssub.s32 512, 512
          %338 = vsyncadd [#allocation9], %s337
          %s339 = sshll.u32 [#allocation10], 4
          %s340 = int_to_ptr.vmem [resolvable:$true] %s339
          %345 = dma.hbm_to_vmem [thread:$0]  %s7, 512, %s340, [#allocation9], 128, 128, 8
        $region32: #{tpu_custom_call.1} parent=11 // pred_fallthru
          _
        // Predicated region
        $region33: #{tpu_custom_call.1} parent=11 // pred_check
          %p346 = pneg %p234
        $region34: #{tpu_custom_call.1} parent=11 // pred_check_branch
          %348 = sbr.rel (%p346) target = $region36
        $region35: #{tpu_custom_call.1} parent=11 // pred_region
          _
        $region36: #{tpu_custom_call.1} parent=11 // pred_fallthru
          _
      $region12: #{tpu_custom_call.1} parent=5 // pred_fallthru
        _
      %p349 = scmp.lt.s32.totalorder %s30, 2
      // Predicated region
      $region37: #{tpu_custom_call.1} parent=5 // pred_check
        %p350 = pneg %p349
      $region38: #{tpu_custom_call.1} parent=5 // pred_check_branch
        %352 = sbr.rel (%p350) target = $region40
      $region39: #{tpu_custom_call.1} parent=5 // pred_region
        // Predicated region
        $region41: #{tpu_custom_call.1} parent=39 // pred_check
          %p353 = pneg %p50
        $region42: #{tpu_custom_call.1} parent=39 // pred_check_branch
          %355 = sbr.rel (%p353) target = $region44
        $region43: #{tpu_custom_call.1} parent=39 // pred_region
          %s356 = sand.u32 %s40, 1
          %s357 = scalar_lea.sflag [#allocation3], %s356
          %s358 = sand.u32 %s40, 1
          %s359 = smul.addr %s358, 16
          %s360 = scalar_lea.vmem [#allocation2], %s359
          %s362 = ssub.s32 256, 256
          %363 = vsyncadd %s357, %s362
          %s364 = smul.addr %s30, 2
          %s365 = smul.addr %s364, 128
          %s366 = scalar_lea.hbm %s0, %s365
          %s367 = sshll.u32 %s360, 4
          %s368 = int_to_ptr.vmem [resolvable:$true] %s367
          %373 = dma.hbm_to_vmem [thread:$0]  %s366, 256, %s368, %s357, 128, 128, 8
        $region44: #{tpu_custom_call.1} parent=39 // pred_fallthru
          _
        // Predicated region
        $region45: #{tpu_custom_call.1} parent=39 // pred_check
          %p374 = pneg %p76
        $region46: #{tpu_custom_call.1} parent=39 // pred_check_branch
          %376 = sbr.rel (%p374) target = $region48
        $region47: #{tpu_custom_call.1} parent=39 // pred_region
          %s377 = sand.u32 %s30, 1
          %s378 = scalar_lea.sflag [#allocation6], %s377
          %s379 = sand.u32 %s66, 1
          %s380 = smul.addr %s379, 8
          %s381 = scalar_lea.vmem [#allocation5], %s380
          %s383 = ssub.s32 128, 128
          %384 = vsyncadd %s378, %s383
          %s385 = smul.addr %s30, 128
          %s386 = scalar_lea.hbm %s1, %s385
          %s388 = sshll.u32 %s381, 4
          %s389 = int_to_ptr.vmem [resolvable:$true] %s388
          %391 = dma.hbm_to_vmem [thread:$0]  %s386, 128, %s389, %s378
        $region48: #{tpu_custom_call.1} parent=39 // pred_fallthru
          _
        // Predicated region
        $region49: #{tpu_custom_call.1} parent=39 // pred_check
          %p392 = pneg %p102
        $region50: #{tpu_custom_call.1} parent=39 // pred_check_branch
          %394 = sbr.rel (%p392) target = $region52
        $region51: #{tpu_custom_call.1} parent=39 // pred_region
          %p395 = scmp.lt.s32.totalorder %s30, 1
          %s396 = scalar_select %p395, %s30, 1
          %s397 = scalar_lea.vmem %s2, %s396
        $region52: #{tpu_custom_call.1} parent=39 // pred_fallthru
          _
      $region40: #{tpu_custom_call.1} parent=5 // pred_fallthru
        _
      %p398 = scmp.le.s32.totalorder 1, %s30
      %p399 = scmp.lt.s32.totalorder %s30, 3
      %p400 = pnand %p398, %p399
      %p401 = pneg %p400
      // Predicated region
      $region53: #{tpu_custom_call.1} parent=5 // pred_check
        _
      $region54: #{tpu_custom_call.1} parent=5 // pred_check_branch
        %403 = sbr.rel (%p400) target = $region56
      $region55: #{tpu_custom_call.1} parent=5 // pred_region
        %s404 = ssub.s32 %s30, 1
        %s405 = sand.u32 %s43, 1
        %s406 = scalar_lea.sflag [#allocation3], %s405
        %s407 = sand.u32 %s43, 1
        %s408 = smul.addr %s407, 16
        %s409 = scalar_lea.vmem [#allocation2], %s408
        // Predicated region
        $region57: #{tpu_custom_call.1} parent=55 // pred_check
          %p410 = pneg %p56
        $region58: #{tpu_custom_call.1} parent=55 // pred_check_branch
          %412 = sbr.rel (%p410) target = $region60
        $region59: #{tpu_custom_call.1} parent=55 // pred_region
          %413 = dma.done %s406, 256
        $region60: #{tpu_custom_call.1} parent=55 // pred_fallthru
          _
        %s414 = sand.u32 %s35, 1
        %s415 = scalar_lea.sflag [#allocation6], %s414
        %s416 = sand.u32 %s69, 1
        %s417 = smul.addr %s416, 8
        %s418 = scalar_lea.vmem [#allocation5], %s417
        // Predicated region
        $region61: #{tpu_custom_call.1} parent=55 // pred_check
          %p419 = pneg %p82
        $region62: #{tpu_custom_call.1} parent=55 // pred_check_branch
          %421 = sbr.rel (%p419) target = $region64
        $region63: #{tpu_custom_call.1} parent=55 // pred_region
          %422 = dma.done %s415, 128
        $region64: #{tpu_custom_call.1} parent=55 // pred_fallthru
          _
        // Predicated region
        $region65: #{tpu_custom_call.1} parent=55 // pred_check
          %p423 = pneg %p129
        $region66: #{tpu_custom_call.1} parent=55 // pred_check_branch
          %425 = sbr.rel (%p423) target = $region68
        $region67: #{tpu_custom_call.1} parent=55 // pred_region
          %426 = dma.done [#allocation6], 512
        $region68: #{tpu_custom_call.1} parent=55 // pred_fallthru
          _
        // Predicated region
        $region69: #{tpu_custom_call.1} parent=55 // pred_check
          %p427 = pneg %p171
        $region70: #{tpu_custom_call.1} parent=55 // pred_check_branch
          %429 = sbr.rel (%p427) target = $region72
        $region71: #{tpu_custom_call.1} parent=55 // pred_region
          %430 = dma.done [#allocation9], 384
        $region72: #{tpu_custom_call.1} parent=55 // pred_fallthru
          _
        // Predicated region
        $region73: #{tpu_custom_call.1} parent=55 // pred_check
          %p431 = pneg %p213
        $region74: #{tpu_custom_call.1} parent=55 // pred_check_branch
          %433 = sbr.rel (%p431) target = $region76
        $region75: #{tpu_custom_call.1} parent=55 // pred_region
          %434 = dma.done [#allocation9], 512
        $region76: #{tpu_custom_call.1} parent=55 // pred_fallthru
          _
        %s435 = sand.u32 %s43, 1
        %s436 = scalar_lea.sflag [#allocation3], %s435
        %s437 = sand.u32 %s43, 1
        %s438 = smul.addr %s437, 16
        %s439 = scalar_lea.vmem [#allocation2], %s438
        %p440 = pneg %p56
        %p441 = pneg %p53
        %s442 = sand.u32 %s35, 1
        %s443 = scalar_lea.sflag [#allocation6], %s442
        %s444 = sand.u32 %s69, 1
        %s445 = smul.addr %s444, 8
        %s446 = scalar_lea.vmem [#allocation5], %s445
        %p447 = pneg %p82
        %p448 = pneg %p79
        %p449 = scmp.lt.s32.totalorder %s35, 1
        %s450 = scalar_select %p449, %s35, 1
        %s451 = scalar_lea.vmem %s2, %s450
        %p452 = pneg %p108
        %p453 = pneg %p105
        %p454 = pneg %p129
        %p455 = pneg %p126
        %p456 = pneg %p150
        %p457 = pneg %p147
        %p458 = pneg %p171
        %p459 = pneg %p168
        %p460 = pneg %p192
        %p461 = pneg %p189
        %p462 = pneg %p213
        %p463 = pneg %p210
        %p464 = pneg %p234
        %p465 = pneg %p231
        %p466 = pneg %p260
        %p467 = pneg %p257
        %s468 = sand.u32 %s247, 1
        %s469 = scalar_lea.sflag [#allocation4], %s468
        %s470 = sand.u32 %s247, 1
        %s471 = smul.addr %s470, 16
        %s472 = scalar_lea.vmem [#allocation11], %s471
        %p473 = pneg %p286
        %p474 = pneg %p283
        %s475 = sand.u32 %s273, 1
        %s476 = scalar_lea.sflag [#allocation13], %s475
        %s477 = sand.u32 %s273, 1
        %s478 = smul.addr %s477, 16
        %s479 = scalar_lea.vmem [#allocation12], %s478
        %p480 = scmp.lt.s32.totalorder %s35, 1
        %s481 = scalar_select %p480, %s35, 1
        %s482 = scalar_lea.vmem %s2, %s481
        %v483 = vld [vmem:[%s409] sm:$0xff]
        %v484 = vld [vmem:[%s409 + $0x8] sm:$0xff]
        %v485 = vld [vmem:[%s418] sm:$0xff]
        %v486 = vld [vmem:[%s482] sm:$0x1]
        %v487 = vld [vmem:[#allocation7] sm:$0xff]
        %v488 = vld [vmem:[#allocation7 + $0x8] sm:$0xff]
        %v489 = vld [vmem:[#allocation7 + $0x10] sm:$0xff]
        %v490 = vld [vmem:[#allocation7 + $0x18] sm:$0xff]
        %v491 = vld [vmem:[%s4] sm:$0x1]
        %v493 = vlaneseq
        %v494 = vshrl.u32 %v493, 7
        %v495 = vsub.s32 0, %v494
        %v496 = vrot.slane %v491, %v495
        %vm498 = vcmask 261120
        %v500 = vsel %vm498, %v483, 0
        %v503 = vsel %vm498, %v484, 0
        %505 = vmatprep.subr.mxu0 0.0
        %506 = vmatpush1.msra.mxu0 %v487
        %507 = vmatprep.subr.mxu0 0.0
        %508 = vmatpush1.msra.mxu0 %v488
        %509 = vmatprep.subr.mxu0 0.0
        %510 = vmatpush1.msra.mxu0 %v489
        %511 = vmatprep.subr.mxu0 0.0
        %512 = vmatpush1.msra.mxu0 %v490
        %513 = vmatprep.subr.mxu0 0.0
        %514 = vmatpush1.msra.mxu0 0.0
        %515 = vmatprep.subr.mxu0 0.0
        %516 = vmatpush1.msra.mxu0 0.0
        %517 = vmatprep.subr.mxu0 0.0
        %518 = vmatpush1.msra.mxu0 0.0
        %519 = vmatprep.subr.mxu0 0.0
        %520 = vmatpush1.msra.mxu0 0.0
        %521 = vmatprep.subr.mxu0 0.0
        %522 = vmatpush1.msra.mxu0 0.0
        %523 = vmatprep.subr.mxu0 0.0
        %524 = vmatpush1.msra.mxu0 0.0
        %525 = vmatprep.subr.mxu0 0.0
        %526 = vmatpush1.msra.mxu0 0.0
        %527 = vmatprep.subr.mxu0 0.0
        %528 = vmatpush1.msra.mxu0 0.0
        %529 = vmatprep.subr.mxu0 0.0
        %530 = vmatpush1.msra.mxu0 0.0
        %531 = vmatprep.subr.mxu0 0.0
        %532 = vmatpush1.msra.mxu0 0.0
        %533 = vmatprep.subr.mxu0 0.0
        %534 = vmatpush1.msra.mxu0 0.0
        %535 = vmatprep.subr.mxu0 0.0
        %536 = vmatpush1.msra.mxu0 0.0
        %537 = vmatprep.subr.mxu0 0.0
        %538 = vmatpush1.msra.mxu0 0.0
        %539 = vmatprep.subr.mxu0 0.0
        %540 = vmatpush1.msra.mxu0 0.0
        %541 = vmatprep.subr.mxu0 0.0
        %542 = vmatpush1.msra.mxu0 0.0
        %543 = vmatprep.subr.mxu0 0.0
        %544 = vmatpush1.msra.mxu0 0.0
        %545 = vmatprep.subr.mxu0 0.0
        %546 = vmatpush1.msra.mxu0 0.0
        %547 = vmatprep.subr.mxu0 0.0
        %548 = vmatpush1.msra.mxu0 0.0
        %549 = vmatprep.subr.mxu0 0.0
        %550 = vmatpush1.msra.mxu0 0.0
        %551 = vmatprep.subr.mxu0 0.0
        %552 = vmatpush1.msra.mxu0 0.0
        %553 = vmatprep.subr.mxu0 0.0
        %554 = vmatpush1.msra.mxu0 0.0
        %555 = vmatprep.subr.mxu0 0.0
        %556 = vmatpush1.msra.mxu0 0.0
        %557 = vmatprep.subr.mxu0 0.0
        %558 = vmatpush1.msra.mxu0 0.0
        %559 = vmatprep.subr.mxu0 0.0
        %560 = vmatpush1.msra.mxu0 0.0
        %561 = vmatprep.subr.mxu0 0.0
        %562 = vmatpush1.msra.mxu0 0.0
        %563 = vmatprep.subr.mxu0 0.0
        %564 = vmatpush1.msra.mxu0 0.0
        %565 = vmatprep.subr.mxu0 0.0
        %566 = vmatpush1.msra.mxu0 0.0
        %567 = vmatprep.subr.mxu0 0.0
        %568 = vmatpush1.msra.mxu0 0.0
        %569 = vmatprep.mubr.f32.mxu0 0.0
        %570 = vmatmul.mubr.f32.gmra.mrb[0].mxu0 %v500
        %v571 = vpop.f32.mrb[0].mxu0
        %v572 = vadd.f32 %v496, %v571
        %v573 = vpop.f32.mrb[0].mxu0
        %574 = vmatprep.mubr.f32.mxu0 0.0
        %575 = vmatmul.mubr.f32.gmra.mrb[0].mxu0 %v503
        %v576 = vpop.f32.mrb[0].mxu0
        %v577 = vadd.f32 %v496, %v576
        %v578 = vpop.f32.mrb[0].mxu0
        %579 = vdwg.mxu0
        %v580 = vld [vmem:[#allocation8] sm:$0xff]
        %v581 = vld [vmem:[#allocation8 + $0x8] sm:$0xff]
        %v582 = vld [vmem:[#allocation8 + $0x10] sm:$0xff]
        %v583 = vld [vmem:[%s6] sm:$0x1]
        %v585 = vlaneseq
        %v586 = vshrl.u32 %v585, 7
        %v587 = vsub.s32 0, %v586
        %v588 = vrot.slane %v583, %v587
        %vm590 = vcmask 195584
        %v592 = vsel %vm590, %v485, 0
        %594 = vmatprep.subr.mxu0 0.0
        %595 = vmatpush1.msra.mxu0 %v580
        %596 = vmatprep.subr.mxu0 0.0
        %597 = vmatpush1.msra.mxu0 %v581
        %598 = vmatprep.subr.mxu0 0.0
        %599 = vmatpush1.msra.mxu0 %v582
        %600 = vmatprep.subr.mxu0 0.0
        %601 = vmatpush1.msra.mxu0 0.0
        %602 = vmatprep.subr.mxu0 0.0
        %603 = vmatpush1.msra.mxu0 0.0
        %604 = vmatprep.subr.mxu0 0.0
        %605 = vmatpush1.msra.mxu0 0.0
        %606 = vmatprep.subr.mxu0 0.0
        %607 = vmatpush1.msra.mxu0 0.0
        %608 = vmatprep.subr.mxu0 0.0
        %609 = vmatpush1.msra.mxu0 0.0
        %610 = vmatprep.subr.mxu0 0.0
        %611 = vmatpush1.msra.mxu0 0.0
        %612 = vmatprep.subr.mxu0 0.0
        %613 = vmatpush1.msra.mxu0 0.0
        %614 = vmatprep.subr.mxu0 0.0
        %615 = vmatpush1.msra.mxu0 0.0
        %616 = vmatprep.subr.mxu0 0.0
        %617 = vmatpush1.msra.mxu0 0.0
        %618 = vmatprep.subr.mxu0 0.0
        %619 = vmatpush1.msra.mxu0 0.0
        %620 = vmatprep.subr.mxu0 0.0
        %621 = vmatpush1.msra.mxu0 0.0
        %622 = vmatprep.subr.mxu0 0.0
        %623 = vmatpush1.msra.mxu0 0.0
        %624 = vmatprep.subr.mxu0 0.0
        %625 = vmatpush1.msra.mxu0 0.0
        %626 = vmatprep.subr.mxu0 0.0
        %627 = vmatpush1.msra.mxu0 0.0
        %628 = vmatprep.subr.mxu0 0.0
        %629 = vmatpush1.msra.mxu0 0.0
        %630 = vmatprep.subr.mxu0 0.0
        %631 = vmatpush1.msra.mxu0 0.0
        %632 = vmatprep.subr.mxu0 0.0
        %633 = vmatpush1.msra.mxu0 0.0
        %634 = vmatprep.subr.mxu0 0.0
        %635 = vmatpush1.msra.mxu0 0.0
        %636 = vmatprep.subr.mxu0 0.0
        %637 = vmatpush1.msra.mxu0 0.0
        %638 = vmatprep.subr.mxu0 0.0
        %639 = vmatpush1.msra.mxu0 0.0
        %640 = vmatprep.subr.mxu0 0.0
        %641 = vmatpush1.msra.mxu0 0.0
        %642 = vmatprep.subr.mxu0 0.0
        %643 = vmatpush1.msra.mxu0 0.0
        %644 = vmatprep.subr.mxu0 0.0
        %645 = vmatpush1.msra.mxu0 0.0
        %646 = vmatprep.subr.mxu0 0.0
        %647 = vmatpush1.msra.mxu0 0.0
        %648 = vmatprep.subr.mxu0 0.0
        %649 = vmatpush1.msra.mxu0 0.0
        %650 = vmatprep.subr.mxu0 0.0
        %651 = vmatpush1.msra.mxu0 0.0
        %652 = vmatprep.subr.mxu0 0.0
        %653 = vmatpush1.msra.mxu0 0.0
        %654 = vmatprep.subr.mxu0 0.0
        %655 = vmatpush1.msra.mxu0 0.0
        %656 = vmatprep.subr.mxu0 0.0
        %657 = vmatpush1.msra.mxu0 0.0
        %658 = vmatprep.mubr.f32.mxu0 0.0
        %659 = vmatmul.mubr.f32.gmra.mrb[0].mxu0 %v592
        %v660 = vpop.f32.mrb[0].mxu0
        %v661 = vadd.f32 %v588, %v660
        %v662 = vpop.f32.mrb[0].mxu0
        %663 = vdwg.mxu0
        %v664 = vmul.f32 %v572, 0.35355338
        %v665 = vmul.f32 %v577, 0.35355338
        %v667 = vlaneseq
        %v668 = vshrl.u32 %v667, 7
        %v669 = vsub.s32 0, %v668
        %v670 = vrot.slane %v486, %v669
        %vm672 = vcmask 64512
        %v674 = vsel %vm672, %v664, 0
        %v677 = vsel %vm672, %v665, 0
        %v680 = vsel %vm672, %v661, 0
        %682 = vmatprep.subr.mxu0 0.0
        %683 = vmatpush1.xpose.msra.mxu0 %v680
        %684 = vmatprep.subr.mxu0 0.0
        %685 = vmatpush1.xpose.msra.mxu0 0.0
        %686 = vmatprep.subr.mxu0 0.0
        %687 = vmatpush1.xpose.msra.mxu0 0.0
        %688 = vmatprep.subr.mxu0 0.0
        %689 = vmatpush1.xpose.msra.mxu0 0.0
        %690 = vmatprep.subr.mxu0 0.0
        %691 = vmatpush1.xpose.msra.mxu0 0.0
        %692 = vmatprep.subr.mxu0 0.0
        %693 = vmatpush1.xpose.msra.mxu0 0.0
        %694 = vmatprep.subr.mxu0 0.0
        %695 = vmatpush1.xpose.msra.mxu0 0.0
        %696 = vmatprep.subr.mxu0 0.0
        %697 = vmatpush1.xpose.msra.mxu0 0.0
        %698 = vmatprep.subr.mxu0 0.0
        %699 = vmatpush1.xpose.msra.mxu0 0.0
        %700 = vmatprep.subr.mxu0 0.0
        %701 = vmatpush1.xpose.msra.mxu0 0.0
        %702 = vmatprep.subr.mxu0 0.0
        %703 = vmatpush1.xpose.msra.mxu0 0.0
        %704 = vmatprep.subr.mxu0 0.0
        %705 = vmatpush1.xpose.msra.mxu0 0.0
        %706 = vmatprep.subr.mxu0 0.0
        %707 = vmatpush1.xpose.msra.mxu0 0.0
        %708 = vmatprep.subr.mxu0 0.0
        %709 = vmatpush1.xpose.msra.mxu0 0.0
        %710 = vmatprep.subr.mxu0 0.0
        %711 = vmatpush1.xpose.msra.mxu0 0.0
        %712 = vmatprep.subr.mxu0 0.0
        %713 = vmatpush1.xpose.msra.mxu0 0.0
        %714 = vmatprep.subr.mxu0 0.0
        %715 = vmatpush1.xpose.msra.mxu0 0.0
        %716 = vmatprep.subr.mxu0 0.0
        %717 = vmatpush1.xpose.msra.mxu0 0.0
        %718 = vmatprep.subr.mxu0 0.0
        %719 = vmatpush1.xpose.msra.mxu0 0.0
        %720 = vmatprep.subr.mxu0 0.0
        %721 = vmatpush1.xpose.msra.mxu0 0.0
        %722 = vmatprep.subr.mxu0 0.0
        %723 = vmatpush1.xpose.msra.mxu0 0.0
        %724 = vmatprep.subr.mxu0 0.0
        %725 = vmatpush1.xpose.msra.mxu0 0.0
        %726 = vmatprep.subr.mxu0 0.0
        %727 = vmatpush1.xpose.msra.mxu0 0.0
        %728 = vmatprep.subr.mxu0 0.0
        %729 = vmatpush1.xpose.msra.mxu0 0.0
        %730 = vmatprep.subr.mxu0 0.0
        %731 = vmatpush1.xpose.msra.mxu0 0.0
        %732 = vmatprep.subr.mxu0 0.0
        %733 = vmatpush1.xpose.msra.mxu0 0.0
        %734 = vmatprep.subr.mxu0 0.0
        %735 = vmatpush1.xpose.msra.mxu0 0.0
        %736 = vmatprep.subr.mxu0 0.0
        %737 = vmatpush1.xpose.msra.mxu0 0.0
        %738 = vmatprep.subr.mxu0 0.0
        %739 = vmatpush1.xpose.msra.mxu0 0.0
        %740 = vmatprep.subr.mxu0 0.0
        %741 = vmatpush1.xpose.msra.mxu0 0.0
        %742 = vmatprep.subr.mxu0 0.0
        %743 = vmatpush1.xpose.msra.mxu0 0.0
        %744 = vmatprep.subr.mxu0 0.0
        %745 = vmatpush1.xpose.msra.mxu0 0.0
        %746 = vmatprep.mubr.f32.mxu0 0.0
        %747 = vmatmul.mubr.f32.gmra.mrb[0].mxu0 %v674
        %v748 = vpop.f32.mrb[0].mxu0
        %v749 = vadd.f32 %v670, %v748
        %v750 = vpop.f32.mrb[0].mxu0
        %751 = vmatprep.mubr.f32.mxu0 0.0
        %752 = vmatmul.mubr.f32.gmra.mrb[0].mxu0 %v677
        %v753 = vpop.f32.mrb[0].mxu0
        %v754 = vadd.f32 %v670, %v753
        %v755 = vpop.f32.mrb[0].mxu0
        %756 = vdwg.mxu0
        %v757 = vsel %vm672, %v749, -inf
        %758 = vmax.xlane.f32.xlu0 %v757
        %v759 = vpop.xlane.xlu0 %758
        %v760 = vsel %vm672, %v754, -inf
        %761 = vmax.xlane.f32.xlu0 %v760
        %v762 = vpop.xlane.xlu0 %761
        %v763 = vsub.f32 %v749, %v759
        %v764 = vsub.f32 %v754, %v762
        %v765 = vmul.f32 %v763, 1.442695
        %v766 = vpow.pop %v765
        %v767 = vmul.f32 %v764, 1.442695
        %v768 = vpow.pop %v767
        %v769 = vsel %vm672, %v766, 0.0
        %770 = vadd.xlane.f32.xlu0 %v769
        %v771 = vpop.xlane.xlu0 %770
        %v772 = vsel %vm672, %v768, 0.0
        %773 = vadd.xlane.f32.xlu0 %v772
        %v774 = vpop.xlane.xlu0 %773
        %v775 = vrcp.pop %v771
        %v776 = vrcp.pop %v774
        %v777 = vmul.f32 %v771, %v775
        %v778 = vmul.f32 %v774, %v776
        %v779 = vsub.f32 2.0, %v777
        %v780 = vsub.f32 2.0, %v778
        %v781 = vmul.f32 %v775, %v779
        %v782 = vmul.f32 %v776, %v780
        %v783 = vmul.f32 %v766, %v781
        %v784 = vmul.f32 %v768, %v782
        %785 = vrot.lane.b32.xlu0 %v661, 96
        %v786 = vpop.permute.xlu0 %785
        %v789 = vsel %vm672, %v783, 0
        %v792 = vsel %vm672, %v784, 0
        %794 = vmatprep.subr.mxu0 0.0
        %795 = vmatpush1.msra.mxu0 %v786
        %796 = vmatprep.subr.mxu0 0.0
        %797 = vmatpush1.msra.mxu0 0.0
        %798 = vmatprep.subr.mxu0 0.0
        %799 = vmatpush1.msra.mxu0 0.0
        %800 = vmatprep.subr.mxu0 0.0
        %801 = vmatpush1.msra.mxu0 0.0
        %802 = vmatprep.subr.mxu0 0.0
        %803 = vmatpush1.msra.mxu0 0.0
        %804 = vmatprep.subr.mxu0 0.0
        %805 = vmatpush1.msra.mxu0 0.0
        %806 = vmatprep.subr.mxu0 0.0
        %807 = vmatpush1.msra.mxu0 0.0
        %808 = vmatprep.subr.mxu0 0.0
        %809 = vmatpush1.msra.mxu0 0.0
        %810 = vmatprep.subr.mxu0 0.0
        %811 = vmatpush1.msra.mxu0 0.0
        %812 = vmatprep.subr.mxu0 0.0
        %813 = vmatpush1.msra.mxu0 0.0
        %814 = vmatprep.subr.mxu0 0.0
        %815 = vmatpush1.msra.mxu0 0.0
        %816 = vmatprep.subr.mxu0 0.0
        %817 = vmatpush1.msra.mxu0 0.0
        %818 = vmatprep.subr.mxu0 0.0
        %819 = vmatpush1.msra.mxu0 0.0
        %820 = vmatprep.subr.mxu0 0.0
        %821 = vmatpush1.msra.mxu0 0.0
        %822 = vmatprep.subr.mxu0 0.0
        %823 = vmatpush1.msra.mxu0 0.0
        %824 = vmatprep.subr.mxu0 0.0
        %825 = vmatpush1.msra.mxu0 0.0
        %826 = vmatprep.subr.mxu0 0.0
        %827 = vmatpush1.msra.mxu0 0.0
        %828 = vmatprep.subr.mxu0 0.0
        %829 = vmatpush1.msra.mxu0 0.0
        %830 = vmatprep.subr.mxu0 0.0
        %831 = vmatpush1.msra.mxu0 0.0
        %832 = vmatprep.subr.mxu0 0.0
        %833 = vmatpush1.msra.mxu0 0.0
        %834 = vmatprep.subr.mxu0 0.0
        %835 = vmatpush1.msra.mxu0 0.0
        %836 = vmatprep.subr.mxu0 0.0
        %837 = vmatpush1.msra.mxu0 0.0
        %838 = vmatprep.subr.mxu0 0.0
        %839 = vmatpush1.msra.mxu0 0.0
        %840 = vmatprep.subr.mxu0 0.0
        %841 = vmatpush1.msra.mxu0 0.0
        %842 = vmatprep.subr.mxu0 0.0
        %843 = vmatpush1.msra.mxu0 0.0
        %844 = vmatprep.subr.mxu0 0.0
        %845 = vmatpush1.msra.mxu0 0.0
        %846 = vmatprep.subr.mxu0 0.0
        %847 = vmatpush1.msra.mxu0 0.0
        %848 = vmatprep.subr.mxu0 0.0
        %849 = vmatpush1.msra.mxu0 0.0
        %850 = vmatprep.subr.mxu0 0.0
        %851 = vmatpush1.msra.mxu0 0.0
        %852 = vmatprep.subr.mxu0 0.0
        %853 = vmatpush1.msra.mxu0 0.0
        %854 = vmatprep.subr.mxu0 0.0
        %855 = vmatpush1.msra.mxu0 0.0
        %856 = vmatprep.subr.mxu0 0.0
        %857 = vmatpush1.msra.mxu0 0.0
        %858 = vmatprep.mubr.f32.mxu0 0.0
        %859 = vmatmul.mubr.f32.gmra.mrb[0].mxu0 %v789
        %v860 = vpop.f32.mrb[0].mxu0
        %v861 = vadd.f32 0.0, %v860
        %v862 = vpop.f32.mrb[0].mxu0
        %863 = vmatprep.mubr.f32.mxu0 0.0
        %864 = vmatmul.mubr.f32.gmra.mrb[0].mxu0 %v792
        %v865 = vpop.f32.mrb[0].mxu0
        %v866 = vadd.f32 0.0, %v865
        %v867 = vpop.f32.mrb[0].mxu0
        %868 = vdwg.mxu0
        %869 = vrot.lane.b32.xlu0 %v664, 120
        %v870 = vpop.permute.xlu0 %869
        %871 = vrot.lane.b32.xlu0 %v665, 120
        %v872 = vpop.permute.xlu0 %871
        %873 = vrot.lane.b32.xlu0 %v661, 120
        %v874 = vpop.permute.xlu0 %873
        %v875 = vsel %vm672, %v870, 0
        %v877 = vsel %vm672, %v872, 0
        %v879 = vsel %vm672, %v874, 0
        %881 = vmatprep.subr.mxu0 0.0
        %882 = vmatpush1.xpose.msra.mxu0 %v879
        %883 = vmatprep.subr.mxu0 0.0
        %884 = vmatpush1.xpose.msra.mxu0 0.0
        %885 = vmatprep.subr.mxu0 0.0
        %886 = vmatpush1.xpose.msra.mxu0 0.0
        %887 = vmatprep.subr.mxu0 0.0
        %888 = vmatpush1.xpose.msra.mxu0 0.0
        %889 = vmatprep.subr.mxu0 0.0
        %890 = vmatpush1.xpose.msra.mxu0 0.0
        %891 = vmatprep.subr.mxu0 0.0
        %892 = vmatpush1.xpose.msra.mxu0 0.0
        %893 = vmatprep.subr.mxu0 0.0
        %894 = vmatpush1.xpose.msra.mxu0 0.0
        %895 = vmatprep.subr.mxu0 0.0
        %896 = vmatpush1.xpose.msra.mxu0 0.0
        %897 = vmatprep.subr.mxu0 0.0
        %898 = vmatpush1.xpose.msra.mxu0 0.0
        %899 = vmatprep.subr.mxu0 0.0
        %900 = vmatpush1.xpose.msra.mxu0 0.0
        %901 = vmatprep.subr.mxu0 0.0
        %902 = vmatpush1.xpose.msra.mxu0 0.0
        %903 = vmatprep.subr.mxu0 0.0
        %904 = vmatpush1.xpose.msra.mxu0 0.0
        %905 = vmatprep.subr.mxu0 0.0
        %906 = vmatpush1.xpose.msra.mxu0 0.0
        %907 = vmatprep.subr.mxu0 0.0
        %908 = vmatpush1.xpose.msra.mxu0 0.0
        %909 = vmatprep.subr.mxu0 0.0
        %910 = vmatpush1.xpose.msra.mxu0 0.0
        %911 = vmatprep.subr.mxu0 0.0
        %912 = vmatpush1.xpose.msra.mxu0 0.0
        %913 = vmatprep.subr.mxu0 0.0
        %914 = vmatpush1.xpose.msra.mxu0 0.0
        %915 = vmatprep.subr.mxu0 0.0
        %916 = vmatpush1.xpose.msra.mxu0 0.0
        %917 = vmatprep.subr.mxu0 0.0
        %918 = vmatpush1.xpose.msra.mxu0 0.0
        %919 = vmatprep.subr.mxu0 0.0
        %920 = vmatpush1.xpose.msra.mxu0 0.0
        %921 = vmatprep.subr.mxu0 0.0
        %922 = vmatpush1.xpose.msra.mxu0 0.0
        %923 = vmatprep.subr.mxu0 0.0
        %924 = vmatpush1.xpose.msra.mxu0 0.0
        %925 = vmatprep.subr.mxu0 0.0
        %926 = vmatpush1.xpose.msra.mxu0 0.0
        %927 = vmatprep.subr.mxu0 0.0
        %928 = vmatpush1.xpose.msra.mxu0 0.0
        %929 = vmatprep.subr.mxu0 0.0
        %930 = vmatpush1.xpose.msra.mxu0 0.0
        %931 = vmatprep.subr.mxu0 0.0
        %932 = vmatpush1.xpose.msra.mxu0 0.0
        %933 = vmatprep.subr.mxu0 0.0
        %934 = vmatpush1.xpose.msra.mxu0 0.0
        %935 = vmatprep.subr.mxu0 0.0
        %936 = vmatpush1.xpose.msra.mxu0 0.0
        %937 = vmatprep.subr.mxu0 0.0
        %938 = vmatpush1.xpose.msra.mxu0 0.0
        %939 = vmatprep.subr.mxu0 0.0
        %940 = vmatpush1.xpose.msra.mxu0 0.0
        %941 = vmatprep.subr.mxu0 0.0
        %942 = vmatpush1.xpose.msra.mxu0 0.0
        %943 = vmatprep.subr.mxu0 0.0
        %944 = vmatpush1.xpose.msra.mxu0 0.0
        %945 = vmatprep.mubr.f32.mxu0 0.0
        %946 = vmatmul.mubr.f32.gmra.mrb[0].mxu0 %v875
        %v947 = vpop.f32.mrb[0].mxu0
        %v948 = vadd.f32 %v670, %v947
        %v949 = vpop.f32.mrb[0].mxu0
        %950 = vmatprep.mubr.f32.mxu0 0.0
        %951 = vmatmul.mubr.f32.gmra.mrb[0].mxu0 %v877
        %v952 = vpop.f32.mrb[0].mxu0
        %v953 = vadd.f32 %v670, %v952
        %v954 = vpop.f32.mrb[0].mxu0
        %955 = vdwg.mxu0
        %v956 = vsel %vm672, %v948, -inf
        %957 = vmax.xlane.f32.xlu0 %v956
        %v958 = vpop.xlane.xlu0 %957
        %v959 = vsel %vm672, %v953, -inf
        %960 = vmax.xlane.f32.xlu0 %v959
        %v961 = vpop.xlane.xlu0 %960
        %v962 = vsub.f32 %v948, %v958
        %v963 = vsub.f32 %v953, %v961
        %v964 = vmul.f32 %v962, 1.442695
        %v965 = vpow.pop %v964
        %v966 = vmul.f32 %v963, 1.442695
        %v967 = vpow.pop %v966
        %v968 = vsel %vm672, %v965, 0.0
        %969 = vadd.xlane.f32.xlu0 %v968
        %v970 = vpop.xlane.xlu0 %969
        %v971 = vsel %vm672, %v967, 0.0
        %972 = vadd.xlane.f32.xlu0 %v971
        %v973 = vpop.xlane.xlu0 %972
        %v974 = vrcp.pop %v970
        %v975 = vrcp.pop %v973
        %v976 = vmul.f32 %v970, %v974
        %v977 = vmul.f32 %v973, %v975
        %v978 = vsub.f32 2.0, %v976
        %v979 = vsub.f32 2.0, %v977
        %v980 = vmul.f32 %v974, %v978
        %v981 = vmul.f32 %v975, %v979
        %v982 = vmul.f32 %v965, %v980
        %v983 = vmul.f32 %v967, %v981
        %984 = vrot.lane.b32.xlu0 %v661, 88
        %v985 = vpop.permute.xlu0 %984
        %v988 = vsel %vm672, %v982, 0
        %v991 = vsel %vm672, %v983, 0
        %993 = vmatprep.subr.mxu0 0.0
        %994 = vmatpush1.msra.mxu0 %v985
        %995 = vmatprep.subr.mxu0 0.0
        %996 = vmatpush1.msra.mxu0 0.0
        %997 = vmatprep.subr.mxu0 0.0
        %998 = vmatpush1.msra.mxu0 0.0
        %999 = vmatprep.subr.mxu0 0.0
        %1000 = vmatpush1.msra.mxu0 0.0
        %1001 = vmatprep.subr.mxu0 0.0
        %1002 = vmatpush1.msra.mxu0 0.0
        %1003 = vmatprep.subr.mxu0 0.0
        %1004 = vmatpush1.msra.mxu0 0.0
        %1005 = vmatprep.subr.mxu0 0.0
        %1006 = vmatpush1.msra.mxu0 0.0
        %1007 = vmatprep.subr.mxu0 0.0
        %1008 = vmatpush1.msra.mxu0 0.0
        %1009 = vmatprep.subr.mxu0 0.0
        %1010 = vmatpush1.msra.mxu0 0.0
        %1011 = vmatprep.subr.mxu0 0.0
        %1012 = vmatpush1.msra.mxu0 0.0
        %1013 = vmatprep.subr.mxu0 0.0
        %1014 = vmatpush1.msra.mxu0 0.0
        %1015 = vmatprep.subr.mxu0 0.0
        %1016 = vmatpush1.msra.mxu0 0.0
        %1017 = vmatprep.subr.mxu0 0.0
        %1018 = vmatpush1.msra.mxu0 0.0
        %1019 = vmatprep.subr.mxu0 0.0
        %1020 = vmatpush1.msra.mxu0 0.0
        %1021 = vmatprep.subr.mxu0 0.0
        %1022 = vmatpush1.msra.mxu0 0.0
        %1023 = vmatprep.subr.mxu0 0.0
        %1024 = vmatpush1.msra.mxu0 0.0
        %1025 = vmatprep.subr.mxu0 0.0
        %1026 = vmatpush1.msra.mxu0 0.0
        %1027 = vmatprep.subr.mxu0 0.0
        %1028 = vmatpush1.msra.mxu0 0.0
        %1029 = vmatprep.subr.mxu0 0.0
        %1030 = vmatpush1.msra.mxu0 0.0
        %1031 = vmatprep.subr.mxu0 0.0
        %1032 = vmatpush1.msra.mxu0 0.0
        %1033 = vmatprep.subr.mxu0 0.0
        %1034 = vmatpush1.msra.mxu0 0.0
        %1035 = vmatprep.subr.mxu0 0.0
        %1036 = vmatpush1.msra.mxu0 0.0
        %1037 = vmatprep.subr.mxu0 0.0
        %1038 = vmatpush1.msra.mxu0 0.0
        %1039 = vmatprep.subr.mxu0 0.0
        %1040 = vmatpush1.msra.mxu0 0.0
        %1041 = vmatprep.subr.mxu0 0.0
        %1042 = vmatpush1.msra.mxu0 0.0
        %1043 = vmatprep.subr.mxu0 0.0
        %1044 = vmatpush1.msra.mxu0 0.0
        %1045 = vmatprep.subr.mxu0 0.0
        %1046 = vmatpush1.msra.mxu0 0.0
        %1047 = vmatprep.subr.mxu0 0.0
        %1048 = vmatpush1.msra.mxu0 0.0
        %1049 = vmatprep.subr.mxu0 0.0
        %1050 = vmatpush1.msra.mxu0 0.0
        %1051 = vmatprep.subr.mxu0 0.0
        %1052 = vmatpush1.msra.mxu0 0.0
        %1053 = vmatprep.subr.mxu0 0.0
        %1054 = vmatpush1.msra.mxu0 0.0
        %1055 = vmatprep.subr.mxu0 0.0
        %1056 = vmatpush1.msra.mxu0 0.0
        %1057 = vmatprep.mubr.f32.mxu0 0.0
        %1058 = vmatmul.mubr.f32.gmra.mrb[0].mxu0 %v988
        %v1059 = vpop.f32.mrb[0].mxu0
        %v1060 = vadd.f32 0.0, %v1059
        %v1061 = vpop.f32.mrb[0].mxu0
        %1062 = vmatprep.mubr.f32.mxu0 0.0
        %1063 = vmatmul.mubr.f32.gmra.mrb[0].mxu0 %v991
        %v1064 = vpop.f32.mrb[0].mxu0
        %v1065 = vadd.f32 0.0, %v1064
        %v1066 = vpop.f32.mrb[0].mxu0
        %1067 = vdwg.mxu0
        %1068 = vrot.lane.b32.xlu0 %v664, 112
        %v1069 = vpop.permute.xlu0 %1068
        %1070 = vrot.lane.b32.xlu0 %v665, 112
        %v1071 = vpop.permute.xlu0 %1070
        %1072 = vrot.lane.b32.xlu0 %v661, 112
        %v1073 = vpop.permute.xlu0 %1072
        %v1074 = vsel %vm672, %v1069, 0
        %v1076 = vsel %vm672, %v1071, 0
        %v1078 = vsel %vm672, %v1073, 0
        %1080 = vmatprep.subr.mxu0 0.0
        %1081 = vmatpush1.xpose.msra.mxu0 %v1078
        %1082 = vmatprep.subr.mxu0 0.0
        %1083 = vmatpush1.xpose.msra.mxu0 0.0
        %1084 = vmatprep.subr.mxu0 0.0
        %1085 = vmatpush1.xpose.msra.mxu0 0.0
        %1086 = vmatprep.subr.mxu0 0.0
        %1087 = vmatpush1.xpose.msra.mxu0 0.0
        %1088 = vmatprep.subr.mxu0 0.0
        %1089 = vmatpush1.xpose.msra.mxu0 0.0
        %1090 = vmatprep.subr.mxu0 0.0
        %1091 = vmatpush1.xpose.msra.mxu0 0.0
        %1092 = vmatprep.subr.mxu0 0.0
        %1093 = vmatpush1.xpose.msra.mxu0 0.0
        %1094 = vmatprep.subr.mxu0 0.0
        %1095 = vmatpush1.xpose.msra.mxu0 0.0
        %1096 = vmatprep.subr.mxu0 0.0
        %1097 = vmatpush1.xpose.msra.mxu0 0.0
        %1098 = vmatprep.subr.mxu0 0.0
        %1099 = vmatpush1.xpose.msra.mxu0 0.0
        %1100 = vmatprep.subr.mxu0 0.0
        %1101 = vmatpush1.xpose.msra.mxu0 0.0
        %1102 = vmatprep.subr.mxu0 0.0
        %1103 = vmatpush1.xpose.msra.mxu0 0.0
        %1104 = vmatprep.subr.mxu0 0.0
        %1105 = vmatpush1.xpose.msra.mxu0 0.0
        %1106 = vmatprep.subr.mxu0 0.0
        %1107 = vmatpush1.xpose.msra.mxu0 0.0
        %1108 = vmatprep.subr.mxu0 0.0
        %1109 = vmatpush1.xpose.msra.mxu0 0.0
        %1110 = vmatprep.subr.mxu0 0.0
        %1111 = vmatpush1.xpose.msra.mxu0 0.0
        %1112 = vmatprep.subr.mxu0 0.0
        %1113 = vmatpush1.xpose.msra.mxu0 0.0
        %1114 = vmatprep.subr.mxu0 0.0
        %1115 = vmatpush1.xpose.msra.mxu0 0.0
        %1116 = vmatprep.subr.mxu0 0.0
        %1117 = vmatpush1.xpose.msra.mxu0 0.0
        %1118 = vmatprep.subr.mxu0 0.0
        %1119 = vmatpush1.xpose.msra.mxu0 0.0
        %1120 = vmatprep.subr.mxu0 0.0
        %1121 = vmatpush1.xpose.msra.mxu0 0.0
        %1122 = vmatprep.subr.mxu0 0.0
        %1123 = vmatpush1.xpose.msra.mxu0 0.0
        %1124 = vmatprep.subr.mxu0 0.0
        %1125 = vmatpush1.xpose.msra.mxu0 0.0
        %1126 = vmatprep.subr.mxu0 0.0
        %1127 = vmatpush1.xpose.msra.mxu0 0.0
        %1128 = vmatprep.subr.mxu0 0.0
        %1129 = vmatpush1.xpose.msra.mxu0 0.0
        %1130 = vmatprep.subr.mxu0 0.0
        %1131 = vmatpush1.xpose.msra.mxu0 0.0
        %1132 = vmatprep.subr.mxu0 0.0
        %1133 = vmatpush1.xpose.msra.mxu0 0.0
        %1134 = vmatprep.subr.mxu0 0.0
        %1135 = vmatpush1.xpose.msra.mxu0 0.0
        %1136 = vmatprep.subr.mxu0 0.0
        %1137 = vmatpush1.xpose.msra.mxu0 0.0
        %1138 = vmatprep.subr.mxu0 0.0
        %1139 = vmatpush1.xpose.msra.mxu0 0.0
        %1140 = vmatprep.subr.mxu0 0.0
        %1141 = vmatpush1.xpose.msra.mxu0 0.0
        %1142 = vmatprep.subr.mxu0 0.0
        %1143 = vmatpush1.xpose.msra.mxu0 0.0
        %1144 = vmatprep.mubr.f32.mxu0 0.0
        %1145 = vmatmul.mubr.f32.gmra.mrb[0].mxu0 %v1074
        %v1146 = vpop.f32.mrb[0].mxu0
        %v1147 = vadd.f32 %v670, %v1146
        %v1148 = vpop.f32.mrb[0].mxu0
        %1149 = vmatprep.mubr.f32.mxu0 0.0
        %1150 = vmatmul.mubr.f32.gmra.mrb[0].mxu0 %v1076
        %v1151 = vpop.f32.mrb[0].mxu0
        %v1152 = vadd.f32 %v670, %v1151
        %v1153 = vpop.f32.mrb[0].mxu0
        %1154 = vdwg.mxu0
        %v1155 = vsel %vm672, %v1147, -inf
        %1156 = vmax.xlane.f32.xlu0 %v1155
        %v1157 = vpop.xlane.xlu0 %1156
        %v1158 = vsel %vm672, %v1152, -inf
        %1159 = vmax.xlane.f32.xlu0 %v1158
        %v1160 = vpop.xlane.xlu0 %1159
        %v1161 = vsub.f32 %v1147, %v1157
        %v1162 = vsub.f32 %v1152, %v1160
        %v1163 = vmul.f32 %v1161, 1.442695
        %v1164 = vpow.pop %v1163
        %v1165 = vmul.f32 %v1162, 1.442695
        %v1166 = vpow.pop %v1165
        %v1167 = vsel %vm672, %v1164, 0.0
        %1168 = vadd.xlane.f32.xlu0 %v1167
        %v1169 = vpop.xlane.xlu0 %1168
        %v1170 = vsel %vm672, %v1166, 0.0
        %1171 = vadd.xlane.f32.xlu0 %v1170
        %v1172 = vpop.xlane.xlu0 %1171
        %v1173 = vrcp.pop %v1169
        %v1174 = vrcp.pop %v1172
        %v1175 = vmul.f32 %v1169, %v1173
        %v1176 = vmul.f32 %v1172, %v1174
        %v1177 = vsub.f32 2.0, %v1175
        %v1178 = vsub.f32 2.0, %v1176
        %v1179 = vmul.f32 %v1173, %v1177
        %v1180 = vmul.f32 %v1174, %v1178
        %v1181 = vmul.f32 %v1164, %v1179
        %v1182 = vmul.f32 %v1166, %v1180
        %1183 = vrot.lane.b32.xlu0 %v661, 80
        %v1184 = vpop.permute.xlu0 %1183
        %v1187 = vsel %vm672, %v1181, 0
        %v1190 = vsel %vm672, %v1182, 0
        %1192 = vmatprep.subr.mxu0 0.0
        %1193 = vmatpush1.msra.mxu0 %v1184
        %1194 = vmatprep.subr.mxu0 0.0
        %1195 = vmatpush1.msra.mxu0 0.0
        %1196 = vmatprep.subr.mxu0 0.0
        %1197 = vmatpush1.msra.mxu0 0.0
        %1198 = vmatprep.subr.mxu0 0.0
        %1199 = vmatpush1.msra.mxu0 0.0
        %1200 = vmatprep.subr.mxu0 0.0
        %1201 = vmatpush1.msra.mxu0 0.0
        %1202 = vmatprep.subr.mxu0 0.0
        %1203 = vmatpush1.msra.mxu0 0.0
        %1204 = vmatprep.subr.mxu0 0.0
        %1205 = vmatpush1.msra.mxu0 0.0
        %1206 = vmatprep.subr.mxu0 0.0
        %1207 = vmatpush1.msra.mxu0 0.0
        %1208 = vmatprep.subr.mxu0 0.0
        %1209 = vmatpush1.msra.mxu0 0.0
        %1210 = vmatprep.subr.mxu0 0.0
        %1211 = vmatpush1.msra.mxu0 0.0
        %1212 = vmatprep.subr.mxu0 0.0
        %1213 = vmatpush1.msra.mxu0 0.0
        %1214 = vmatprep.subr.mxu0 0.0
        %1215 = vmatpush1.msra.mxu0 0.0
        %1216 = vmatprep.subr.mxu0 0.0
        %1217 = vmatpush1.msra.mxu0 0.0
        %1218 = vmatprep.subr.mxu0 0.0
        %1219 = vmatpush1.msra.mxu0 0.0
        %1220 = vmatprep.subr.mxu0 0.0
        %1221 = vmatpush1.msra.mxu0 0.0
        %1222 = vmatprep.subr.mxu0 0.0
        %1223 = vmatpush1.msra.mxu0 0.0
        %1224 = vmatprep.subr.mxu0 0.0
        %1225 = vmatpush1.msra.mxu0 0.0
        %1226 = vmatprep.subr.mxu0 0.0
        %1227 = vmatpush1.msra.mxu0 0.0
        %1228 = vmatprep.subr.mxu0 0.0
        %1229 = vmatpush1.msra.mxu0 0.0
        %1230 = vmatprep.subr.mxu0 0.0
        %1231 = vmatpush1.msra.mxu0 0.0
        %1232 = vmatprep.subr.mxu0 0.0
        %1233 = vmatpush1.msra.mxu0 0.0
        %1234 = vmatprep.subr.mxu0 0.0
        %1235 = vmatpush1.msra.mxu0 0.0
        %1236 = vmatprep.subr.mxu0 0.0
        %1237 = vmatpush1.msra.mxu0 0.0
        %1238 = vmatprep.subr.mxu0 0.0
        %1239 = vmatpush1.msra.mxu0 0.0
        %1240 = vmatprep.subr.mxu0 0.0
        %1241 = vmatpush1.msra.mxu0 0.0
        %1242 = vmatprep.subr.mxu0 0.0
        %1243 = vmatpush1.msra.mxu0 0.0
        %1244 = vmatprep.subr.mxu0 0.0
        %1245 = vmatpush1.msra.mxu0 0.0
        %1246 = vmatprep.subr.mxu0 0.0
        %1247 = vmatpush1.msra.mxu0 0.0
        %1248 = vmatprep.subr.mxu0 0.0
        %1249 = vmatpush1.msra.mxu0 0.0
        %1250 = vmatprep.subr.mxu0 0.0
        %1251 = vmatpush1.msra.mxu0 0.0
        %1252 = vmatprep.subr.mxu0 0.0
        %1253 = vmatpush1.msra.mxu0 0.0
        %1254 = vmatprep.subr.mxu0 0.0
        %1255 = vmatpush1.msra.mxu0 0.0
        %1256 = vmatprep.mubr.f32.mxu0 0.0
        %1257 = vmatmul.mubr.f32.gmra.mrb[0].mxu0 %v1187
        %v1258 = vpop.f32.mrb[0].mxu0
        %v1259 = vadd.f32 0.0, %v1258
        %v1260 = vpop.f32.mrb[0].mxu0
        %1261 = vmatprep.mubr.f32.mxu0 0.0
        %1262 = vmatmul.mubr.f32.gmra.mrb[0].mxu0 %v1190
        %v1263 = vpop.f32.mrb[0].mxu0
        %v1264 = vadd.f32 0.0, %v1263
        %v1265 = vpop.f32.mrb[0].mxu0
        %1266 = vdwg.mxu0
        %1267 = vrot.lane.b32.xlu0 %v664, 104
        %v1268 = vpop.permute.xlu0 %1267
        %1269 = vrot.lane.b32.xlu0 %v665, 104
        %v1270 = vpop.permute.xlu0 %1269
        %1271 = vrot.lane.b32.xlu0 %v661, 104
        %v1272 = vpop.permute.xlu0 %1271
        %v1273 = vsel %vm672, %v1268, 0
        %v1275 = vsel %vm672, %v1270, 0
        %v1277 = vsel %vm672, %v1272, 0
        %1279 = vmatprep.subr.mxu0 0.0
        %1280 = vmatpush1.xpose.msra.mxu0 %v1277
        %1281 = vmatprep.subr.mxu0 0.0
        %1282 = vmatpush1.xpose.msra.mxu0 0.0
        %1283 = vmatprep.subr.mxu0 0.0
        %1284 = vmatpush1.xpose.msra.mxu0 0.0
        %1285 = vmatprep.subr.mxu0 0.0
        %1286 = vmatpush1.xpose.msra.mxu0 0.0
        %1287 = vmatprep.subr.mxu0 0.0
        %1288 = vmatpush1.xpose.msra.mxu0 0.0
        %1289 = vmatprep.subr.mxu0 0.0
        %1290 = vmatpush1.xpose.msra.mxu0 0.0
        %1291 = vmatprep.subr.mxu0 0.0
        %1292 = vmatpush1.xpose.msra.mxu0 0.0
        %1293 = vmatprep.subr.mxu0 0.0
        %1294 = vmatpush1.xpose.msra.mxu0 0.0
        %1295 = vmatprep.subr.mxu0 0.0
        %1296 = vmatpush1.xpose.msra.mxu0 0.0
        %1297 = vmatprep.subr.mxu0 0.0
        %1298 = vmatpush1.xpose.msra.mxu0 0.0
        %1299 = vmatprep.subr.mxu0 0.0
        %1300 = vmatpush1.xpose.msra.mxu0 0.0
        %1301 = vmatprep.subr.mxu0 0.0
        %1302 = vmatpush1.xpose.msra.mxu0 0.0
        %1303 = vmatprep.subr.mxu0 0.0
        %1304 = vmatpush1.xpose.msra.mxu0 0.0
        %1305 = vmatprep.subr.mxu0 0.0
        %1306 = vmatpush1.xpose.msra.mxu0 0.0
        %1307 = vmatprep.subr.mxu0 0.0
        %1308 = vmatpush1.xpose.msra.mxu0 0.0
        %1309 = vmatprep.subr.mxu0 0.0
        %1310 = vmatpush1.xpose.msra.mxu0 0.0
        %1311 = vmatprep.subr.mxu0 0.0
        %1312 = vmatpush1.xpose.msra.mxu0 0.0
        %1313 = vmatprep.subr.mxu0 0.0
        %1314 = vmatpush1.xpose.msra.mxu0 0.0
        %1315 = vmatprep.subr.mxu0 0.0
        %1316 = vmatpush1.xpose.msra.mxu0 0.0
        %1317 = vmatprep.subr.mxu0 0.0
        %1318 = vmatpush1.xpose.msra.mxu0 0.0
        %1319 = vmatprep.subr.mxu0 0.0
        %1320 = vmatpush1.xpose.msra.mxu0 0.0
        %1321 = vmatprep.subr.mxu0 0.0
        %1322 = vmatpush1.xpose.msra.mxu0 0.0
        %1323 = vmatprep.subr.mxu0 0.0
        %1324 = vmatpush1.xpose.msra.mxu0 0.0
        %1325 = vmatprep.subr.mxu0 0.0
        %1326 = vmatpush1.xpose.msra.mxu0 0.0
        %1327 = vmatprep.subr.mxu0 0.0
        %1328 = vmatpush1.xpose.msra.mxu0 0.0
        %1329 = vmatprep.subr.mxu0 0.0
        %1330 = vmatpush1.xpose.msra.mxu0 0.0
        %1331 = vmatprep.subr.mxu0 0.0
        %1332 = vmatpush1.xpose.msra.mxu0 0.0
        %1333 = vmatprep.subr.mxu0 0.0
        %1334 = vmatpush1.xpose.msra.mxu0 0.0
        %1335 = vmatprep.subr.mxu0 0.0
        %1336 = vmatpush1.xpose.msra.mxu0 0.0
        %1337 = vmatprep.subr.mxu0 0.0
        %1338 = vmatpush1.xpose.msra.mxu0 0.0
        %1339 = vmatprep.subr.mxu0 0.0
        %1340 = vmatpush1.xpose.msra.mxu0 0.0
        %1341 = vmatprep.subr.mxu0 0.0
        %1342 = vmatpush1.xpose.msra.mxu0 0.0
        %1343 = vmatprep.mubr.f32.mxu0 0.0
        %1344 = vmatmul.mubr.f32.gmra.mrb[0].mxu0 %v1273
        %v1345 = vpop.f32.mrb[0].mxu0
        %v1346 = vadd.f32 %v670, %v1345
        %v1347 = vpop.f32.mrb[0].mxu0
        %1348 = vmatprep.mubr.f32.mxu0 0.0
        %1349 = vmatmul.mubr.f32.gmra.mrb[0].mxu0 %v1275
        %v1350 = vpop.f32.mrb[0].mxu0
        %v1351 = vadd.f32 %v670, %v1350
        %v1352 = vpop.f32.mrb[0].mxu0
        %1353 = vdwg.mxu0
        %v1354 = vsel %vm672, %v1346, -inf
        %1355 = vmax.xlane.f32.xlu0 %v1354
        %v1356 = vpop.xlane.xlu0 %1355
        %v1357 = vsel %vm672, %v1351, -inf
        %1358 = vmax.xlane.f32.xlu0 %v1357
        %v1359 = vpop.xlane.xlu0 %1358
        %v1360 = vsub.f32 %v1346, %v1356
        %v1361 = vsub.f32 %v1351, %v1359
        %v1362 = vmul.f32 %v1360, 1.442695
        %v1363 = vpow.pop %v1362
        %v1364 = vmul.f32 %v1361, 1.442695
        %v1365 = vpow.pop %v1364
        %v1366 = vsel %vm672, %v1363, 0.0
        %1367 = vadd.xlane.f32.xlu0 %v1366
        %v1368 = vpop.xlane.xlu0 %1367
        %v1369 = vsel %vm672, %v1365, 0.0
        %1370 = vadd.xlane.f32.xlu0 %v1369
        %v1371 = vpop.xlane.xlu0 %1370
        %v1372 = vrcp.pop %v1368
        %v1373 = vrcp.pop %v1371
        %v1374 = vmul.f32 %v1368, %v1372
        %v1375 = vmul.f32 %v1371, %v1373
        %v1376 = vsub.f32 2.0, %v1374
        %v1377 = vsub.f32 2.0, %v1375
        %v1378 = vmul.f32 %v1372, %v1376
        %v1379 = vmul.f32 %v1373, %v1377
        %v1380 = vmul.f32 %v1363, %v1378
        %v1381 = vmul.f32 %v1365, %v1379
        %1382 = vrot.lane.b32.xlu0 %v661, 72
        %v1383 = vpop.permute.xlu0 %1382
        %v1386 = vsel %vm672, %v1380, 0
        %v1389 = vsel %vm672, %v1381, 0
        %1391 = vmatprep.subr.mxu0 0.0
        %1392 = vmatpush1.msra.mxu0 %v1383
        %1393 = vmatprep.subr.mxu0 0.0
        %1394 = vmatpush1.msra.mxu0 0.0
        %1395 = vmatprep.subr.mxu0 0.0
        %1396 = vmatpush1.msra.mxu0 0.0
        %1397 = vmatprep.subr.mxu0 0.0
        %1398 = vmatpush1.msra.mxu0 0.0
        %1399 = vmatprep.subr.mxu0 0.0
        %1400 = vmatpush1.msra.mxu0 0.0
        %1401 = vmatprep.subr.mxu0 0.0
        %1402 = vmatpush1.msra.mxu0 0.0
        %1403 = vmatprep.subr.mxu0 0.0
        %1404 = vmatpush1.msra.mxu0 0.0
        %1405 = vmatprep.subr.mxu0 0.0
        %1406 = vmatpush1.msra.mxu0 0.0
        %1407 = vmatprep.subr.mxu0 0.0
        %1408 = vmatpush1.msra.mxu0 0.0
        %1409 = vmatprep.subr.mxu0 0.0
        %1410 = vmatpush1.msra.mxu0 0.0
        %1411 = vmatprep.subr.mxu0 0.0
        %1412 = vmatpush1.msra.mxu0 0.0
        %1413 = vmatprep.subr.mxu0 0.0
        %1414 = vmatpush1.msra.mxu0 0.0
        %1415 = vmatprep.subr.mxu0 0.0
        %1416 = vmatpush1.msra.mxu0 0.0
        %1417 = vmatprep.subr.mxu0 0.0
        %1418 = vmatpush1.msra.mxu0 0.0
        %1419 = vmatprep.subr.mxu0 0.0
        %1420 = vmatpush1.msra.mxu0 0.0
        %1421 = vmatprep.subr.mxu0 0.0
        %1422 = vmatpush1.msra.mxu0 0.0
        %1423 = vmatprep.subr.mxu0 0.0
        %1424 = vmatpush1.msra.mxu0 0.0
        %1425 = vmatprep.subr.mxu0 0.0
        %1426 = vmatpush1.msra.mxu0 0.0
        %1427 = vmatprep.subr.mxu0 0.0
        %1428 = vmatpush1.msra.mxu0 0.0
        %1429 = vmatprep.subr.mxu0 0.0
        %1430 = vmatpush1.msra.mxu0 0.0
        %1431 = vmatprep.subr.mxu0 0.0
        %1432 = vmatpush1.msra.mxu0 0.0
        %1433 = vmatprep.subr.mxu0 0.0
        %1434 = vmatpush1.msra.mxu0 0.0
        %1435 = vmatprep.subr.mxu0 0.0
        %1436 = vmatpush1.msra.mxu0 0.0
        %1437 = vmatprep.subr.mxu0 0.0
        %1438 = vmatpush1.msra.mxu0 0.0
        %1439 = vmatprep.subr.mxu0 0.0
        %1440 = vmatpush1.msra.mxu0 0.0
        %1441 = vmatprep.subr.mxu0 0.0
        %1442 = vmatpush1.msra.mxu0 0.0
        %1443 = vmatprep.subr.mxu0 0.0
        %1444 = vmatpush1.msra.mxu0 0.0
        %1445 = vmatprep.subr.mxu0 0.0
        %1446 = vmatpush1.msra.mxu0 0.0
        %1447 = vmatprep.subr.mxu0 0.0
        %1448 = vmatpush1.msra.mxu0 0.0
        %1449 = vmatprep.subr.mxu0 0.0
        %1450 = vmatpush1.msra.mxu0 0.0
        %1451 = vmatprep.subr.mxu0 0.0
        %1452 = vmatpush1.msra.mxu0 0.0
        %1453 = vmatprep.subr.mxu0 0.0
        %1454 = vmatpush1.msra.mxu0 0.0
        %1455 = vmatprep.mubr.f32.mxu0 0.0
        %1456 = vmatmul.mubr.f32.gmra.mrb[0].mxu0 %v1386
        %v1457 = vpop.f32.mrb[0].mxu0
        %v1458 = vadd.f32 0.0, %v1457
        %v1459 = vpop.f32.mrb[0].mxu0
        %1460 = vmatprep.mubr.f32.mxu0 0.0
        %1461 = vmatmul.mubr.f32.gmra.mrb[0].mxu0 %v1389
        %v1462 = vpop.f32.mrb[0].mxu0
        %v1463 = vadd.f32 0.0, %v1462
        %v1464 = vpop.f32.mrb[0].mxu0
        %1465 = vdwg.mxu0
        %1468 = vrot.lane.b32.xlu0 %v1060, 8
        %v1469 = vpop.permute.xlu0 %1468
        %1470 = vrot.lane.b32.xlu0 %v1065, 8
        %v1471 = vpop.permute.xlu0 %1470
        %1476 = vrot.lane.b32.xlu0 %v1259, 16
        %v1477 = vpop.permute.xlu0 %1476
        %1478 = vrot.lane.b32.xlu0 %v1264, 16
        %v1479 = vpop.permute.xlu0 %1478
        %1484 = vrot.lane.b32.xlu0 %v1458, 24
        %v1485 = vpop.permute.xlu0 %1484
        %1486 = vrot.lane.b32.xlu0 %v1463, 24
        %v1487 = vpop.permute.xlu0 %1486
        %v1490 = vsel %vm672, %v861, %v1469
        %v1491 = vsel %vm672, %v866, %v1471
        %vm1492 = vcmask 130048
        %v1493 = vsel %vm1492, %v1490, %v1477
        %v1494 = vsel %vm1492, %v1491, %v1479
        %v1495 = vsel %vm590, %v1493, %v1485
        %v1496 = vsel %vm590, %v1494, %v1487
        %v1497 = vld [vmem:[#allocation10] sm:$0xff]
        %v1498 = vld [vmem:[#allocation10 + $0x8] sm:$0xff]
        %v1499 = vld [vmem:[#allocation10 + $0x10] sm:$0xff]
        %v1500 = vld [vmem:[#allocation10 + $0x18] sm:$0xff]
        %v1501 = vld [vmem:[%s8] sm:$0x1]
        %v1503 = vlaneseq
        %v1504 = vshrl.u32 %v1503, 7
        %v1505 = vsub.s32 0, %v1504
        %v1506 = vrot.slane %v1501, %v1505
        %v1509 = vsel %vm498, %v1495, 0
        %v1512 = vsel %vm498, %v1496, 0
        %1514 = vmatprep.subr.mxu0 0.0
        %1515 = vmatpush1.msra.mxu0 %v1497
        %1516 = vmatprep.subr.mxu0 0.0
        %1517 = vmatpush1.msra.mxu0 %v1498
        %1518 = vmatprep.subr.mxu0 0.0
        %1519 = vmatpush1.msra.mxu0 %v1499
        %1520 = vmatprep.subr.mxu0 0.0
        %1521 = vmatpush1.msra.mxu0 %v1500
        %1522 = vmatprep.subr.mxu0 0.0
        %1523 = vmatpush1.msra.mxu0 0.0
        %1524 = vmatprep.subr.mxu0 0.0
        %1525 = vmatpush1.msra.mxu0 0.0
        %1526 = vmatprep.subr.mxu0 0.0
        %1527 = vmatpush1.msra.mxu0 0.0
        %1528 = vmatprep.subr.mxu0 0.0
        %1529 = vmatpush1.msra.mxu0 0.0
        %1530 = vmatprep.subr.mxu0 0.0
        %1531 = vmatpush1.msra.mxu0 0.0
        %1532 = vmatprep.subr.mxu0 0.0
        %1533 = vmatpush1.msra.mxu0 0.0
        %1534 = vmatprep.subr.mxu0 0.0
        %1535 = vmatpush1.msra.mxu0 0.0
        %1536 = vmatprep.subr.mxu0 0.0
        %1537 = vmatpush1.msra.mxu0 0.0
        %1538 = vmatprep.subr.mxu0 0.0
        %1539 = vmatpush1.msra.mxu0 0.0
        %1540 = vmatprep.subr.mxu0 0.0
        %1541 = vmatpush1.msra.mxu0 0.0
        %1542 = vmatprep.subr.mxu0 0.0
        %1543 = vmatpush1.msra.mxu0 0.0
        %1544 = vmatprep.subr.mxu0 0.0
        %1545 = vmatpush1.msra.mxu0 0.0
        %1546 = vmatprep.subr.mxu0 0.0
        %1547 = vmatpush1.msra.mxu0 0.0
        %1548 = vmatprep.subr.mxu0 0.0
        %1549 = vmatpush1.msra.mxu0 0.0
        %1550 = vmatprep.subr.mxu0 0.0
        %1551 = vmatpush1.msra.mxu0 0.0
        %1552 = vmatprep.subr.mxu0 0.0
        %1553 = vmatpush1.msra.mxu0 0.0
        %1554 = vmatprep.subr.mxu0 0.0
        %1555 = vmatpush1.msra.mxu0 0.0
        %1556 = vmatprep.subr.mxu0 0.0
        %1557 = vmatpush1.msra.mxu0 0.0
        %1558 = vmatprep.subr.mxu0 0.0
        %1559 = vmatpush1.msra.mxu0 0.0
        %1560 = vmatprep.subr.mxu0 0.0
        %1561 = vmatpush1.msra.mxu0 0.0
        %1562 = vmatprep.subr.mxu0 0.0
        %1563 = vmatpush1.msra.mxu0 0.0
        %1564 = vmatprep.subr.mxu0 0.0
        %1565 = vmatpush1.msra.mxu0 0.0
        %1566 = vmatprep.subr.mxu0 0.0
        %1567 = vmatpush1.msra.mxu0 0.0
        %1568 = vmatprep.subr.mxu0 0.0
        %1569 = vmatpush1.msra.mxu0 0.0
        %1570 = vmatprep.subr.mxu0 0.0
        %1571 = vmatpush1.msra.mxu0 0.0
        %1572 = vmatprep.subr.mxu0 0.0
        %1573 = vmatpush1.msra.mxu0 0.0
        %1574 = vmatprep.subr.mxu0 0.0
        %1575 = vmatpush1.msra.mxu0 0.0
        %1576 = vmatprep.subr.mxu0 0.0
        %1577 = vmatpush1.msra.mxu0 0.0
        %1578 = vmatprep.mubr.f32.mxu0 0.0
        %1579 = vmatmul.mubr.f32.gmra.mrb[0].mxu0 %v1509
        %v1580 = vpop.f32.mrb[0].mxu0
        %v1581 = vadd.f32 %v1506, %v1580
        %v1582 = vpop.f32.mrb[0].mxu0
        %1583 = vmatprep.mubr.f32.mxu0 0.0
        %1584 = vmatmul.mubr.f32.gmra.mrb[0].mxu0 %v1512
        %v1585 = vpop.f32.mrb[0].mxu0
        %v1586 = vadd.f32 %v1506, %v1585
        %v1587 = vpop.f32.mrb[0].mxu0
        %1588 = vdwg.mxu0
        %1589 = vst.msk [vmem:[%s472] sm:$0xff] %vm498, %v1581
        %1590 = vst.msk [vmem:[%s472 + $0x8] sm:$0xff] %vm498, %v1586
        %1591 = vrot.lane.b32.xlu0 %v982, 8
        %v1592 = vpop.permute.xlu0 %1591
        %1593 = vrot.lane.b32.xlu0 %v983, 8
        %v1594 = vpop.permute.xlu0 %1593
        %1597 = vrot.lane.b32.xlu0 %v1181, 16
        %v1598 = vpop.permute.xlu0 %1597
        %1599 = vrot.lane.b32.xlu0 %v1182, 16
        %v1600 = vpop.permute.xlu0 %1599
        %1603 = vrot.lane.b32.xlu0 %v1380, 24
        %v1604 = vpop.permute.xlu0 %1603
        %1605 = vrot.lane.b32.xlu0 %v1381, 24
        %v1606 = vpop.permute.xlu0 %1605
        %v1609 = vsel %vm672, %v783, %v1592
        %v1610 = vsel %vm672, %v784, %v1594
        %v1611 = vsel %vm1492, %v1609, %v1598
        %v1612 = vsel %vm1492, %v1610, %v1600
        %v1613 = vsel %vm590, %v1611, %v1604
        %v1614 = vsel %vm590, %v1612, %v1606
        %1615 = vst.msk [vmem:[%s479] sm:$0xff] %vm498, %v1613
        %1616 = vst.msk [vmem:[%s479 + $0x8] sm:$0xff] %vm498, %v1614
        %s1617 = sand.u32 %s247, 1
        %s1618 = scalar_lea.sflag [#allocation4], %s1617
        %s1619 = sand.u32 %s247, 1
        %s1620 = smul.addr %s1619, 16
        %s1621 = scalar_lea.vmem [#allocation11], %s1620
        %s1622 = sand.u32 %s273, 1
        %s1623 = scalar_lea.sflag [#allocation13], %s1622
        %s1624 = sand.u32 %s273, 1
        %s1625 = smul.addr %s1624, 16
        %s1626 = scalar_lea.vmem [#allocation12], %s1625
        // Predicated region
        $region77: #{tpu_custom_call.1} parent=55 // pred_check
          %p1627 = pneg %p257
        $region78: #{tpu_custom_call.1} parent=55 // pred_check_branch
          %1629 = sbr.rel (%p1627) target = $region80
        $region79: #{tpu_custom_call.1} parent=55 // pred_region
          %s1631 = ssub.s32 256, 256
          %1632 = vsyncadd %s1618, %s1631
          %s1633 = smul.addr %s35, 2
          %s1634 = smul.addr %s1633, 128
          %s1635 = scalar_lea.hbm %s9, %s1634
          %s1636 = sshll.u32 %s1621, 4
          %s1637 = int_to_ptr.vmem [resolvable:$true] %s1636
          %1642 = dma.vmem_to_hbm [thread:$0]  %s1637, 256, %s1635, %s1618, 128, 128, 8
        $region80: #{tpu_custom_call.1} parent=55 // pred_fallthru
          _
        // Predicated region
        $region81: #{tpu_custom_call.1} parent=55 // pred_check
          %p1643 = pneg %p283
        $region82: #{tpu_custom_call.1} parent=55 // pred_check_branch
          %1645 = sbr.rel (%p1643) target = $region84
        $region83: #{tpu_custom_call.1} parent=55 // pred_region
          %s1647 = ssub.s32 256, 256
          %1648 = vsyncadd %s1623, %s1647
          %s1649 = smul.addr %s35, 2
          %s1650 = smul.addr %s1649, 128
          %s1651 = scalar_lea.hbm %s10, %s1650
          %s1652 = sshll.u32 %s1626, 4
          %s1653 = int_to_ptr.vmem [resolvable:$true] %s1652
          %1658 = dma.vmem_to_hbm [thread:$0]  %s1653, 256, %s1651, %s1623, 128, 128, 8
        $region84: #{tpu_custom_call.1} parent=55 // pred_fallthru
          _
      $region56: #{tpu_custom_call.1} parent=5 // pred_fallthru
        _
      %p1659 = scmp.le.s32.totalorder 2, %s30
      // Predicated region
      $region85: #{tpu_custom_call.1} parent=5 // pred_check
        %p1660 = pneg %p1659
      $region86: #{tpu_custom_call.1} parent=5 // pred_check_branch
        %1662 = sbr.rel (%p1660) target = $region88
      $region87: #{tpu_custom_call.1} parent=5 // pred_region
        %s1663 = ssub.s32 %s30, 2
        // Predicated region
        $region89: #{tpu_custom_call.1} parent=87 // pred_check
          %p1664 = pneg %p263
        $region90: #{tpu_custom_call.1} parent=87 // pred_check_branch
          %1666 = sbr.rel (%p1664) target = $region92
        $region91: #{tpu_custom_call.1} parent=87 // pred_region
          %s1667 = sand.u32 %s248, 1
          %s1668 = scalar_lea.sflag [#allocation4], %s1667
          %s1669 = sand.u32 %s248, 1
          %s1670 = smul.addr %s1669, 16
          %s1671 = scalar_lea.vmem [#allocation11], %s1670
          %1672 = dma.done %s1668, 256
        $region92: #{tpu_custom_call.1} parent=87 // pred_fallthru
          _
        // Predicated region
        $region93: #{tpu_custom_call.1} parent=87 // pred_check
          %p1673 = pneg %p289
        $region94: #{tpu_custom_call.1} parent=87 // pred_check_branch
          %1675 = sbr.rel (%p1673) target = $region96
        $region95: #{tpu_custom_call.1} parent=87 // pred_region
          %s1676 = sand.u32 %s274, 1
          %s1677 = scalar_lea.sflag [#allocation13], %s1676
          %s1678 = sand.u32 %s274, 1
          %s1679 = smul.addr %s1678, 16
          %s1680 = scalar_lea.vmem [#allocation12], %s1679
          %1681 = dma.done %s1677, 256
        $region96: #{tpu_custom_call.1} parent=87 // pred_fallthru
          _
      $region88: #{tpu_custom_call.1} parent=5 // pred_fallthru
        _
    $region6: #{tpu_custom_call.1} parent=1 // loop_footer
      %s34 = sadd.s32 1, %s30
    $region7: #{tpu_custom_call.1} parent=1 // loop_footer_branch
      %29 = sbr.rel target = $region3
    $region8: #{tpu_custom_call.1} parent=1 // loop_exit
      _
    %1682 = vsyncpa [#allocation3], 1
    %s1683 = scalar_lea.sflag [#allocation3], 1
    %1684 = vsyncpa %s1683, 1
    %1685 = vsyncpa [#allocation6], 1
    %s1686 = scalar_lea.sflag [#allocation6], 1
    %1687 = vsyncpa %s1686, 1
    %1688 = vsyncpa [#allocation9], 1
    %1689 = vsyncpa [#allocation4], 1
    %s1690 = scalar_lea.sflag [#allocation4], 1
    %1691 = vsyncpa %s1690, 1
    %1692 = vsyncpa [#allocation13], 1
    %s1693 = scalar_lea.sflag [#allocation13], 1
    %1694 = vsyncpa %s1693, 1

</llo_original>
